<compile_context>
chip_gen: v7x
topology: tpu7x:2x2x1
jax: 0.10.0
libtpu: 0.0.40
codegen_flags: <defaults>
</compile_context>

<pallas_src>
import functools
import math

import jax
import jax.numpy as jnp
from jax import lax
from jax.experimental import pallas as pl
from jax.experimental.pallas import tpu as pltpu


def _round_up(x, m):
    return (x + m - 1) // m * m


# ---------------------------------------------------------------------------
# Kernels
# ---------------------------------------------------------------------------

def _ffn_kernel_resident(x_ref, w_in_ref, b_in_ref, wh_ref, bh_ref,
                         w_out_ref, b_out_ref, o_ref, *, num_layers, unroll):
    """All weights resident in VMEM; one row tile through the whole MLP.

    x_ref:     (TILE_N, Dp)
    w_in_ref:  (Dp, Hp)      b_in_ref:  (1, Hp)
    wh_ref:    (L, Hp, Hp)   bh_ref:    (L, 1, Hp)
    w_out_ref: (Hp, Op)      b_out_ref: (1, Op)
    o_ref:     (TILE_N, Op)
    """
    cdt = w_in_ref.dtype  # matmul operand dtype (f32 default, bf16 optional)

    h = jnp.dot(x_ref[...].astype(cdt), w_in_ref[...],
                preferred_element_type=jnp.float32)
    h = jnp.maximum(h + b_in_ref[...].astype(jnp.float32), 0.0)

    def layer(l, h):
        hh = jnp.dot(h.astype(cdt), wh_ref[l],
                     preferred_element_type=jnp.float32)
        return jnp.maximum(hh + bh_ref[l].astype(jnp.float32), 0.0)
        # dropout(p=0.0) is the identity -> nothing to do.

    if unroll:                      # small L: static unroll (LLO visibility)
        for l in range(num_layers):
            h = layer(l, h)
    else:                           # large L: bound code size / live ranges
        h = lax.fori_loop(0, num_layers, layer, h)

    o_ref[...] = (jnp.dot(h.astype(cdt), w_out_ref[...],
                          preferred_element_type=jnp.float32)
                  + b_out_ref[...].astype(jnp.float32)).astype(o_ref.dtype)


def _ffn_kernel_streamed(x_ref, w_in_ref, b_in_ref, wh_ref, bh_ref,
                         w_out_ref, b_out_ref, o_ref, h_ref, *, num_layers):
    """Layer-streamed variant: grid = (row_tiles, num_layers).

    Per grid step only one layer's (1, Hp, Hp) weight tile is live (double
    buffered by the pipeline); h is carried across the layer axis in VMEM
    scratch. First/last linears run inside pl.when at l==0 / l==L-1.
    """
    cdt = w_in_ref.dtype
    l = pl.program_id(1)

    @pl.when(l == 0)
    def _():
        h0 = jnp.dot(x_ref[...].astype(cdt), w_in_ref[...],
                     preferred_element_type=jnp.float32)
        h_ref[...] = jnp.maximum(h0 + b_in_ref[...].astype(jnp.float32), 0.0)

    hh = jnp.dot(h_ref[...].astype(cdt), wh_ref[0],
                 preferred_element_type=jnp.float32)
    h_ref[...] = jnp.maximum(hh + bh_ref[0].astype(jnp.float32), 0.0)

    @pl.when(l == num_layers - 1)
    def _():
        o_ref[...] = (jnp.dot(h_ref[...].astype(cdt), w_out_ref[...],
                              preferred_element_type=jnp.float32)
                      + b_out_ref[...].astype(jnp.float32)).astype(o_ref.dtype)


# ---------------------------------------------------------------------------
# Parameter padding (done ONCE, outside the per-call hot path)
# ---------------------------------------------------------------------------

def pad_params(params, *, compute_dtype=jnp.float32):
    """Zero-pad feature dims to multiples of 128 (lane-dense, exact padding).

    compute_dtype=jnp.bfloat16 halves resident weight VMEM and unlocks the
    MXU's bf16 peak, at the cost of ~1e-2 accuracy vs the f32 reference.
    """
    w_in, b_in = params["w_in"], params["b_in"]
    w_h, b_h = params["w_h"], params["b_h"]
    w_out, b_out = params["w_out"], params["b_out"]

    in_dim, hidden_dim = w_in.shape
    out_dim = w_out.shape[1]
    num_layers = w_h.shape[0]

    Dp = _round_up(in_dim, 128)
    Hp = _round_up(hidden_dim, 128)
    Op = _round_up(out_dim, 128)
    wdt = compute_dtype

    return {
        "w_in": jnp.zeros((Dp, Hp), wdt).at[:in_dim, :hidden_dim].set(w_in.astype(wdt)),
        "b_in": jnp.zeros((1, Hp), jnp.float32).at[0, :hidden_dim].set(b_in.astype(jnp.float32)),
        "w_h": jnp.zeros((num_layers, Hp, Hp), wdt).at[:, :hidden_dim, :hidden_dim].set(w_h.astype(wdt)),
        "b_h": jnp.zeros((num_layers, 1, Hp), jnp.float32).at[:, 0, :hidden_dim].set(b_h.astype(jnp.float32)),
        "w_out": jnp.zeros((Hp, Op), wdt).at[:hidden_dim, :out_dim].set(w_out.astype(wdt)),
        "b_out": jnp.zeros((1, Op), jnp.float32).at[0, :out_dim].set(b_out.astype(jnp.float32)),
        "dims": (int(in_dim), int(hidden_dim), int(out_dim), int(num_layers)),
    }


# ---------------------------------------------------------------------------
# Forward wrapper
# ---------------------------------------------------------------------------

def feedforward_net_forward(x, padded_params, *, tile_n=512, variant=None):
    """x: (..., in_dim) -> (..., out_dim), matching FeedForwardNet.forward.

    `padded_params` comes from pad_params(); `variant` in {None, "resident",
    "streamed"} (None = auto-select from the VMEM budget).
    """
    in_dim, hidden_dim, out_dim, num_layers = padded_params["dims"]
    w_in_p, b_in_p = padded_params["w_in"], padded_params["b_in"]
    wh_p, bh_p = padded_params["w_h"], padded_params["b_h"]
    w_out_p, b_out_p = padded_params["w_out"], padded_params["b_out"]

    Dp, Hp = w_in_p.shape
    Op = w_out_p.shape[1]
    wsize = jnp.dtype(w_in_p.dtype).itemsize

    lead_shape = x.shape[:-1]
    N = math.prod(lead_shape) if lead_shape else 1
    x2 = x.reshape(N, in_dim).astype(jnp.float32)

    # ---- Row tiling: multiple of 128 when N allows; >=2 row tiles so the
    # "parallel" axis can feed a second TensorCore (v7x) -------------------
    N8 = _round_up(max(N, 1), 8)
    if N8 >= 256:
        cap = _round_up((N8 + 1) // 2, 128)        # at least 2 grid steps
        TILE_N = min(_round_up(max(tile_n, 128), 128), cap)
    else:
        TILE_N = N8                                # single small tile
    N_pad = _round_up(N8, TILE_N)
    grid_n = N_pad // TILE_N

    # Pad the activation tile only (weights already padded once at init).
    xp = jnp.zeros((N_pad, Dp), jnp.float32).at[:N, :in_dim].set(x2)

    # ---- VMEM budgeting & variant selection ------------------------------
    try:
        vmem_cap = int(pltpu.get_tpu_info().vmem_capacity_bytes)
    except Exception:
        vmem_cap = 64 * 1024 * 1024                # conservative (v7x per-TC)

    bias_bytes = (Hp + num_layers * Hp + Op) * 4
    resident_w = (Dp * Hp + num_layers * Hp * Hp + Hp * Op) * wsize + bias_bytes
    streamed_w = (Dp * Hp + 2 * Hp * Hp + Hp * Op) * wsize + bias_bytes
    act_bytes = (2 * TILE_N * Dp + 2 * TILE_N * Op + TILE_N * Hp) * 4

    if variant is None:
        variant = "resident" if (resident_w + act_bytes) <= int(0.70 * vmem_cap) \
            else "streamed"
    need = (resident_w if variant == "resident" else streamed_w) + act_bytes
    vmem_limit = int(min(max(need * 1.5, 32 * 1024 * 1024), 0.92 * vmem_cap))

    flops = 2 * N_pad * (Dp * Hp + num_layers * Hp * Hp + Hp * Op)
    bytes_accessed = (N_pad * Dp * 4 + N_pad * Op * 4
                      + (Dp * Hp + num_layers * Hp * Hp + Hp * Op) * wsize
                      + bias_bytes)
    cost = pl.CostEstimate(flops=flops, transcendentals=0,
                           bytes_accessed=bytes_accessed)

    out_shape = jax.ShapeDtypeStruct((N_pad, Op), jnp.float32)
    args = (xp, w_in_p, b_in_p, wh_p, bh_p, w_out_p, b_out_p)

    def _wspec(single_buf, shape, idx_map):
        # Constant-index weight blocks: single-buffer to halve their VMEM cost.
        if single_buf:
            return pl.BlockSpec(shape, idx_map, pipeline_mode=pl.Buffered(1))
        return pl.BlockSpec(shape, idx_map)

    def call_resident(single_buf):
        kern = functools.partial(_ffn_kernel_resident, num_layers=num_layers,
                                 unroll=num_layers <= 4)
        return pl.pallas_call(
            kern,
            out_shape=out_shape,
            grid=(grid_n,),
            in_specs=[
                pl.BlockSpec((TILE_N, Dp), lambda i: (i, 0)),          # x tile
                _wspec(single_buf, (Dp, Hp), lambda i: (0, 0)),
                _wspec(single_buf, (1, Hp), lambda i: (0, 0)),
                _wspec(single_buf, (num_layers, Hp, Hp), lambda i: (0, 0, 0)),
                _wspec(single_buf, (num_layers, 1, Hp), lambda i: (0, 0, 0)),
                _wspec(single_buf, (Hp, Op), lambda i: (0, 0)),
                _wspec(single_buf, (1, Op), lambda i: (0, 0)),
            ],
            out_specs=pl.BlockSpec((TILE_N, Op), lambda i: (i, 0)),
            compiler_params=pltpu.CompilerParams(
                dimension_semantics=("parallel",),
                vmem_limit_bytes=vmem_limit),
            cost_estimate=cost,
        )(*args)

    def call_streamed(single_buf):
        kern = functools.partial(_ffn_kernel_streamed, num_layers=num_layers)
        return pl.pallas_call(
            kern,
            out_shape=out_shape,
            grid=(grid_n, num_layers),
            in_specs=[
                pl.BlockSpec((TILE_N, Dp), lambda i, l: (i, 0)),       # x tile
                _wspec(single_buf, (Dp, Hp), lambda i, l: (0, 0)),
                _wspec(single_buf, (1, Hp), lambda i, l: (0, 0)),
                # Per-layer hidden weight/bias streamed along the "arbitrary"
                # layer axis (default double buffering hides the HBM fetch).
                pl.BlockSpec((1, Hp, Hp), lambda i, l: (l, 0, 0)),
                pl.BlockSpec((1, 1, Hp), lambda i, l: (l, 0, 0)),
                _wspec(single_buf, (Hp, Op), lambda i, l: (0, 0)),
                _wspec(single_buf, (1, Op), lambda i, l: (0, 0)),
            ],
            out_specs=pl.BlockSpec((TILE_N, Op), lambda i, l: (i, 0)),
            scratch_shapes=[pltpu.VMEM((TILE_N, Hp), jnp.float32)],    # carried h
            compiler_params=pltpu.CompilerParams(
                dimension_semantics=("parallel", "arbitrary"),
                vmem_limit_bytes=vmem_limit),
            cost_estimate=cost,
        )(*args)

    call = call_resident if variant == "resident" else call_streamed
    try:
        out = call(True)            # single-buffered constant weight blocks
    except Exception:
        out = call(False)           # fallback: default double buffering

    return out[:N, :out_dim].reshape(lead_shape + (out_dim,))


# ---------------------------------------------------------------------------
# Parameter init (deterministic, synthetic) and pure-JAX reference
# ---------------------------------------------------------------------------

def init_params(key, in_dim, hidden_dim, out_dim, num_layers):
    keys = jax.random.split(key, 6)
    scale = 0.1
    return {
        "w_in": scale * jax.random.normal(keys[0], (in_dim, hidden_dim), jnp.float32),
        "b_in": scale * jax.random.normal(keys[1], (hidden_dim,), jnp.float32),
        "w_h": scale * jax.random.normal(keys[2], (num_layers, hidden_dim, hidden_dim), jnp.float32),
        "b_h": scale * jax.random.normal(keys[3], (num_layers, hidden_dim), jnp.float32),
        "w_out": scale * jax.random.normal(keys[4], (hidden_dim, out_dim), jnp.float32),
        "b_out": scale * jax.random.normal(keys[5], (out_dim,), jnp.float32),
    }


def feedforward_net_reference(x, params):
    h = jax.nn.relu(x @ params["w_in"] + params["b_in"])
    for l in range(params["w_h"].shape[0]):
        h = jax.nn.relu(h @ params["w_h"][l] + params["b_h"][l])
    return h @ params["w_out"] + params["b_out"]


if __name__ == "__main__":
    B, T = 2, 16
    key = jax.random.PRNGKey(0)
    kx, kp, kp2 = jax.random.split(key, 3)
    x = jax.random.normal(kx, (B, T, 8), jnp.float32)

    # Config 1: small net, unrolled layer loop, auto (resident) variant.
    in_dim, hidden_dim, out_dim, num_layers = 8, 32, 4, 2
    params = init_params(kp, in_dim, hidden_dim, out_dim, num_layers)
    padded = pad_params(params)                  # padding hoisted out of hot path
    y_ref = feedforward_net_reference(x, params)

    y = jax.block_until_ready(feedforward_net_forward(x, padded))
    assert y.shape == (B, T, out_dim), y.shape
    assert bool(jnp.all(jnp.isfinite(y)))
    assert bool(jnp.allclose(y, y_ref, rtol=1e-5, atol=1e-5)), \
        float(jnp.max(jnp.abs(y - y_ref)))

    # Force the layer-streamed variant (auto-selected when resident weights
    # would exceed the VMEM budget, e.g. large hidden_dim on v7x) and verify.
    y_s = jax.block_until_ready(
        feedforward_net_forward(x, padded, variant="streamed"))
    assert bool(jnp.allclose(y_s, y_ref, rtol=1e-5, atol=1e-5)), \
        float(jnp.max(jnp.abs(y_s - y_ref)))

    # Config 2: deeper net exercising the lax.fori_loop layer path.
    params2 = init_params(kp2, in_dim, hidden_dim, out_dim, 6)
    padded2 = pad_params(params2)
    y2_ref = feedforward_net_reference(x, params2)
    y2 = jax.block_until_ready(feedforward_net_forward(x, padded2))
    assert bool(jnp.allclose(y2, y2_ref, rtol=1e-5, atol=1e-5)), \
        float(jnp.max(jnp.abs(y2 - y2_ref)))

    # TODO(synk): dropout is p=0.0 (identity) in this module config; a nonzero
    # training-mode dropout would need pltpu.prng_* inside the kernel.
    print("KERNEL_OK")
</pallas_src>

<mosaic_0001>
module attributes {stable_mosaic.version = 11 : i64} {
  func.func @_ffn_kernel_resident(%arg0: i32, %arg1: memref<32x128xf32, #tpu.memory_space<vmem>>, %arg2: memref<128x128xf32, #tpu.memory_space<vmem>>, %arg3: memref<1x128xf32, #tpu.memory_space<vmem>>, %arg4: memref<2x128x128xf32, #tpu.memory_space<vmem>>, %arg5: memref<2x1x128xf32, #tpu.memory_space<vmem>>, %arg6: memref<128x128xf32, #tpu.memory_space<vmem>>, %arg7: memref<1x128xf32, #tpu.memory_space<vmem>>, %arg8: memref<32x128xf32, #tpu.memory_space<vmem>>) attributes {dimension_semantics = [#tpu.dimension_semantics<parallel>], iteration_bounds = array<i64: 1>, scalar_prefetch = 0 : i64, scratch_operands = 0 : i64, tpu.core_type = #tpu.core_type<tc>, window_params = [{transform_indices = @transform_0, window_bounds = array<i64: 32, 128>}, {pipeline_mode = #tpu.pipeline_mode<synchronous>, transform_indices = @transform_1, window_bounds = array<i64: 128, 128>}, {pipeline_mode = #tpu.pipeline_mode<synchronous>, transform_indices = @transform_2, window_bounds = array<i64: 1, 128>}, {pipeline_mode = #tpu.pipeline_mode<synchronous>, transform_indices = @transform_3, window_bounds = array<i64: 2, 128, 128>}, {pipeline_mode = #tpu.pipeline_mode<synchronous>, transform_indices = @transform_4, window_bounds = array<i64: 2, 1, 128>}, {pipeline_mode = #tpu.pipeline_mode<synchronous>, transform_indices = @transform_5, window_bounds = array<i64: 128, 128>}, {pipeline_mode = #tpu.pipeline_mode<synchronous>, transform_indices = @transform_6, window_bounds = array<i64: 1, 128>}, {transform_indices = @transform_7, window_bounds = array<i64: 32, 128>}]} {
    %c0 = arith.constant 0 : index
    %c0_0 = arith.constant 0 : index
    %0 = vector.load %arg1[%c0, %c0_0] : memref<32x128xf32, #tpu.memory_space<vmem>>, vector<32x128xf32>
    %c0_1 = arith.constant 0 : index
    %c0_2 = arith.constant 0 : index
    %1 = vector.load %arg2[%c0_1, %c0_2] : memref<128x128xf32, #tpu.memory_space<vmem>>, vector<128x128xf32>
    %cst = arith.constant dense<0.000000e+00> : vector<32x128xf32>
    %2 = tpu.matmul %0, %1, %cst {dimension_numbers = #tpu.dot_dimension_numbers<[1], [0], [0], [1], [0, 0, 1, 1], [], []>} : vector<32x128xf32>, vector<128x128xf32>, vector<32x128xf32> -> vector<32x128xf32>
    %c0_3 = arith.constant 0 : index
    %c0_4 = arith.constant 0 : index
    %3 = vector.load %arg3[%c0_3, %c0_4] : memref<1x128xf32, #tpu.memory_space<vmem>>, vector<1x128xf32>
    %4 = vector.broadcast %3 : vector<1x128xf32> to vector<32x128xf32>
    %5 = arith.addf %2, %4 : vector<32x128xf32>
    %cst_5 = arith.constant 0.000000e+00 : f32
    %6 = vector.broadcast %cst_5 : f32 to vector<32x128xf32>
    %7 = arith.maximumf %5, %6 : vector<32x128xf32>
    %c0_6 = arith.constant 0 : index
    %c0_7 = arith.constant 0 : index
    %c0_8 = arith.constant 0 : index
    %8 = vector.load %arg4[%c0_6, %c0_7, %c0_8] : memref<2x128x128xf32, #tpu.memory_space<vmem>>, vector<1x128x128xf32>
    %9 = vector.shape_cast %8 : vector<1x128x128xf32> to vector<128x128xf32>
    %cst_9 = arith.constant dense<0.000000e+00> : vector<32x128xf32>
    %10 = tpu.matmul %7, %9, %cst_9 {dimension_numbers = #tpu.dot_dimension_numbers<[1], [0], [0], [1], [0, 0, 1, 1], [], []>} : vector<32x128xf32>, vector<128x128xf32>, vector<32x128xf32> -> vector<32x128xf32>
    %c0_10 = arith.constant 0 : index
    %c0_11 = arith.constant 0 : index
    %c0_12 = arith.constant 0 : index
    %11 = vector.load %arg5[%c0_10, %c0_11, %c0_12] : memref<2x1x128xf32, #tpu.memory_space<vmem>>, vector<1x1x128xf32>
    %12 = vector.shape_cast %11 : vector<1x1x128xf32> to vector<1x128xf32>
    %13 = vector.broadcast %12 : vector<1x128xf32> to vector<32x128xf32>
    %14 = arith.addf %10, %13 : vector<32x128xf32>
    %cst_13 = arith.constant 0.000000e+00 : f32
    %15 = vector.broadcast %cst_13 : f32 to vector<32x128xf32>
    %16 = arith.maximumf %14, %15 : vector<32x128xf32>
    %c1 = arith.constant 1 : index
    %c0_14 = arith.constant 0 : index
    %c0_15 = arith.constant 0 : index
    %17 = vector.load %arg4[%c1, %c0_14, %c0_15] : memref<2x128x128xf32, #tpu.memory_space<vmem>>, vector<1x128x128xf32>
    %18 = vector.shape_cast %17 : vector<1x128x128xf32> to vector<128x128xf32>
    %cst_16 = arith.constant dense<0.000000e+00> : vector<32x128xf32>
    %19 = tpu.matmul %16, %18, %cst_16 {dimension_numbers = #tpu.dot_dimension_numbers<[1], [0], [0], [1], [0, 0, 1, 1], [], []>} : vector<32x128xf32>, vector<128x128xf32>, vector<32x128xf32> -> vector<32x128xf32>
    %c1_17 = arith.constant 1 : index
    %c0_18 = arith.constant 0 : index
    %c0_19 = arith.constant 0 : index
    %20 = vector.load %arg5[%c1_17, %c0_18, %c0_19] : memref<2x1x128xf32, #tpu.memory_space<vmem>>, vector<1x1x128xf32>
    %21 = vector.shape_cast %20 : vector<1x1x128xf32> to vector<1x128xf32>
    %22 = vector.broadcast %21 : vector<1x128xf32> to vector<32x128xf32>
    %23 = arith.addf %19, %22 : vector<32x128xf32>
    %cst_20 = arith.constant 0.000000e+00 : f32
    %24 = vector.broadcast %cst_20 : f32 to vector<32x128xf32>
    %25 = arith.maximumf %23, %24 : vector<32x128xf32>
    %c0_21 = arith.constant 0 : index
    %c0_22 = arith.constant 0 : index
    %26 = vector.load %arg6[%c0_21, %c0_22] : memref<128x128xf32, #tpu.memory_space<vmem>>, vector<128x128xf32>
    %cst_23 = arith.constant dense<0.000000e+00> : vector<32x128xf32>
    %27 = tpu.matmul %25, %26, %cst_23 {dimension_numbers = #tpu.dot_dimension_numbers<[1], [0], [0], [1], [0, 0, 1, 1], [], []>} : vector<32x128xf32>, vector<128x128xf32>, vector<32x128xf32> -> vector<32x128xf32>
    %c0_24 = arith.constant 0 : index
    %c0_25 = arith.constant 0 : index
    %28 = vector.load %arg7[%c0_24, %c0_25] : memref<1x128xf32, #tpu.memory_space<vmem>>, vector<1x128xf32>
    %29 = vector.broadcast %28 : vector<1x128xf32> to vector<32x128xf32>
    %30 = arith.addf %27, %29 : vector<32x128xf32>
    %c0_26 = arith.constant 0 : index
    %c0_27 = arith.constant 0 : index
    %31 = vector.load %arg8[%c0_26, %c0_27] : memref<32x128xf32, #tpu.memory_space<vmem>>, vector<32x128xf32>
    tpu.vector_store %arg8[%c0_26, %c0_27], %30 {strides = array<i32>} : memref<32x128xf32, #tpu.memory_space<vmem>>, vector<32x128xf32>,
    return
  }
  func.func @transform_0(%arg0: i32) -> (i32, i32) {
    %c0_i32 = arith.constant 0 : i32
    %c0_i32_0 = arith.constant 0 : i32
    return %arg0, %c0_i32 : i32, i32
  }
  func.func @transform_1(%arg0: i32) -> (i32, i32) {
    %c0_i32 = arith.constant 0 : i32
    %c0_i32_0 = arith.constant 0 : i32
    %c0_i32_1 = arith.constant 0 : i32
    return %c0_i32, %c0_i32_0 : i32, i32
  }
  func.func @transform_2(%arg0: i32) -> (i32, i32) {
    %c0_i32 = arith.constant 0 : i32
    %c0_i32_0 = arith.constant 0 : i32
    %c0_i32_1 = arith.constant 0 : i32
    return %c0_i32, %c0_i32_0 : i32, i32
  }
  func.func @transform_3(%arg0: i32) -> (i32, i32, i32) {
    %c0_i32 = arith.constant 0 : i32
    %c0_i32_0 = arith.constant 0 : i32
    %c0_i32_1 = arith.constant 0 : i32
    %c0_i32_2 = arith.constant 0 : i32
    return %c0_i32, %c0_i32_0, %c0_i32_1 : i32, i32, i32
  }
  func.func @transform_4(%arg0: i32) -> (i32, i32, i32) {
    %c0_i32 = arith.constant 0 : i32
    %c0_i32_0 = arith.constant 0 : i32
    %c0_i32_1 = arith.constant 0 : i32
    %c0_i32_2 = arith.constant 0 : i32
    return %c0_i32, %c0_i32_0, %c0_i32_1 : i32, i32, i32
  }
  func.func @transform_5(%arg0: i32) -> (i32, i32) {
    %c0_i32 = arith.constant 0 : i32
    %c0_i32_0 = arith.constant 0 : i32
    %c0_i32_1 = arith.constant 0 : i32
    return %c0_i32, %c0_i32_0 : i32, i32
  }
  func.func @transform_6(%arg0: i32) -> (i32, i32) {
    %c0_i32 = arith.constant 0 : i32
    %c0_i32_0 = arith.constant 0 : i32
    %c0_i32_1 = arith.constant 0 : i32
    return %c0_i32, %c0_i32_0 : i32, i32
  }
  func.func @transform_7(%arg0: i32) -> (i32, i32) {
    %c0_i32 = arith.constant 0 : i32
    %c0_i32_0 = arith.constant 0 : i32
    return %arg0, %c0_i32 : i32, i32
  }
}

module attributes {stable_mosaic.version = 11 : i64} {
  func.func @_ffn_kernel_resident(%arg0: i32, %arg1: memref<32x128xf32, #tpu.memory_space<vmem>>, %arg2: memref<128x128xf32, #tpu.memory_space<vmem>>, %arg3: memref<1x128xf32, #tpu.memory_space<vmem>>, %arg4: memref<2x128x128xf32, #tpu.memory_space<vmem>>, %arg5: memref<2x1x128xf32, #tpu.memory_space<vmem>>, %arg6: memref<128x128xf32, #tpu.memory_space<vmem>>, %arg7: memref<1x128xf32, #tpu.memory_space<vmem>>, %arg8: memref<32x128xf32, #tpu.memory_space<vmem>>) attributes {dimension_semantics = [#tpu.dimension_semantics<parallel>], iteration_bounds = array<i64: 1>, scalar_prefetch = 0 : i64, scratch_operands = 0 : i64, tpu.core_type = #tpu.core_type<tc>, window_params = [{transform_indices = @transform_0, window_bounds = array<i64: 32, 128>}, {pipeline_mode = #tpu.pipeline_mode<synchronous>, transform_indices = @transform_1, window_bounds = array<i64: 128, 128>}, {pipeline_mode = #tpu.pipeline_mode<synchronous>, transform_indices = @transform_2, window_bounds = array<i64: 1, 128>}, {pipeline_mode = #tpu.pipeline_mode<synchronous>, transform_indices = @transform_3, window_bounds = array<i64: 2, 128, 128>}, {pipeline_mode = #tpu.pipeline_mode<synchronous>, transform_indices = @transform_4, window_bounds = array<i64: 2, 1, 128>}, {pipeline_mode = #tpu.pipeline_mode<synchronous>, transform_indices = @transform_5, window_bounds = array<i64: 128, 128>}, {pipeline_mode = #tpu.pipeline_mode<synchronous>, transform_indices = @transform_6, window_bounds = array<i64: 1, 128>}, {transform_indices = @transform_7, window_bounds = array<i64: 32, 128>}]} {
    %c0 = arith.constant 0 : index
    %c0_0 = arith.constant 0 : index
    %0 = vector.load %arg1[%c0, %c0_0] : memref<32x128xf32, #tpu.memory_space<vmem>>, vector<32x128xf32>
    %c0_1 = arith.constant 0 : index
    %c0_2 = arith.constant 0 : index
    %1 = vector.load %arg2[%c0_1, %c0_2] : memref<128x128xf32, #tpu.memory_space<vmem>>, vector<128x128xf32>
    %cst = arith.constant dense<0.000000e+00> : vector<32x128xf32>
    %2 = tpu.matmul %0, %1, %cst {dimension_numbers = #tpu.dot_dimension_numbers<[1], [0], [0], [1], [0, 0, 1, 1], [], []>} : vector<32x128xf32>, vector<128x128xf32>, vector<32x128xf32> -> vector<32x128xf32>
    %c0_3 = arith.constant 0 : index
    %c0_4 = arith.constant 0 : index
    %3 = vector.load %arg3[%c0_3, %c0_4] : memref<1x128xf32, #tpu.memory_space<vmem>>, vector<1x128xf32>
    %4 = vector.broadcast %3 : vector<1x128xf32> to vector<32x128xf32>
    %5 = arith.addf %2, %4 : vector<32x128xf32>
    %cst_5 = arith.constant 0.000000e+00 : f32
    %6 = vector.broadcast %cst_5 : f32 to vector<32x128xf32>
    %7 = arith.maximumf %5, %6 : vector<32x128xf32>
    %c0_6 = arith.constant 0 : index
    %c0_7 = arith.constant 0 : index
    %c0_8 = arith.constant 0 : index
    %8 = vector.load %arg4[%c0_6, %c0_7, %c0_8] : memref<2x128x128xf32, #tpu.memory_space<vmem>>, vector<1x128x128xf32>
    %9 = vector.shape_cast %8 : vector<1x128x128xf32> to vector<128x128xf32>
    %cst_9 = arith.constant dense<0.000000e+00> : vector<32x128xf32>
    %10 = tpu.matmul %7, %9, %cst_9 {dimension_numbers = #tpu.dot_dimension_numbers<[1], [0], [0], [1], [0, 0, 1, 1], [], []>} : vector<32x128xf32>, vector<128x128xf32>, vector<32x128xf32> -> vector<32x128xf32>
    %c0_10 = arith.constant 0 : index
    %c0_11 = arith.constant 0 : index
    %c0_12 = arith.constant 0 : index
    %11 = vector.load %arg5[%c0_10, %c0_11, %c0_12] : memref<2x1x128xf32, #tpu.memory_space<vmem>>, vector<1x1x128xf32>
    %12 = vector.shape_cast %11 : vector<1x1x128xf32> to vector<1x128xf32>
    %13 = vector.broadcast %12 : vector<1x128xf32> to vector<32x128xf32>
    %14 = arith.addf %10, %13 : vector<32x128xf32>
    %cst_13 = arith.constant 0.000000e+00 : f32
    %15 = vector.broadcast %cst_13 : f32 to vector<32x128xf32>
    %16 = arith.maximumf %14, %15 : vector<32x128xf32>
    %c1 = arith.constant 1 : index
    %c0_14 = arith.constant 0 : index
    %c0_15 = arith.constant 0 : index
    %17 = vector.load %arg4[%c1, %c0_14, %c0_15] : memref<2x128x128xf32, #tpu.memory_space<vmem>>, vector<1x128x128xf32>
    %18 = vector.shape_cast %17 : vector<1x128x128xf32> to vector<128x128xf32>
    %cst_16 = arith.constant dense<0.000000e+00> : vector<32x128xf32>
    %19 = tpu.matmul %16, %18, %cst_16 {dimension_numbers = #tpu.dot_dimension_numbers<[1], [0], [0], [1], [0, 0, 1, 1], [], []>} : vector<32x128xf32>, vector<128x128xf32>, vector<32x128xf32> -> vector<32x128xf32>
    %c1_17 = arith.constant 1 : index
    %c0_18 = arith.constant 0 : index
    %c0_19 = arith.constant 0 : index
    %20 = vector.load %arg5[%c1_17, %c0_18, %c0_19] : memref<2x1x128xf32, #tpu.memory_space<vmem>>, vector<1x1x128xf32>
    %21 = vector.shape_cast %20 : vector<1x1x128xf32> to vector<1x128xf32>
    %22 = vector.broadcast %21 : vector<1x128xf32> to vector<32x128xf32>
    %23 = arith.addf %19, %22 : vector<32x128xf32>
    %cst_20 = arith.constant 0.000000e+00 : f32
    %24 = vector.broadcast %cst_20 : f32 to vector<32x128xf32>
    %25 = arith.maximumf %23, %24 : vector<32x128xf32>
    %c0_21 = arith.constant 0 : index
    %c0_22 = arith.constant 0 : index
    %26 = vector.load %arg6[%c0_21, %c0_22] : memref<128x128xf32, #tpu.memory_space<vmem>>, vector<128x128xf32>
    %cst_23 = arith.constant dense<0.000000e+00> : vector<32x128xf32>
    %27 = tpu.matmul %25, %26, %cst_23 {dimension_numbers = #tpu.dot_dimension_numbers<[1], [0], [0], [1], [0, 0, 1, 1], [], []>} : vector<32x128xf32>, vector<128x128xf32>, vector<32x128xf32> -> vector<32x128xf32>
    %c0_24 = arith.constant 0 : index
    %c0_25 = arith.constant 0 : index
    %28 = vector.load %arg7[%c0_24, %c0_25] : memref<1x128xf32, #tpu.memory_space<vmem>>, vector<1x128xf32>
    %29 = vector.broadcast %28 : vector<1x128xf32> to vector<32x128xf32>
    %30 = arith.addf %27, %29 : vector<32x128xf32>
    %c0_26 = arith.constant 0 : index
    %c0_27 = arith.constant 0 : index
    %31 = vector.load %arg8[%c0_26, %c0_27] : memref<32x128xf32, #tpu.memory_space<vmem>>, vector<32x128xf32>
    tpu.vector_store %arg8[%c0_26, %c0_27], %30 {strides = array<i32>} : memref<32x128xf32, #tpu.memory_space<vmem>>, vector<32x128xf32>,
    return
  }
  func.func @transform_0(%arg0: i32) -> (i32, i32) {
    %c0_i32 = arith.constant 0 : i32
    %c0_i32_0 = arith.constant 0 : i32
    return %arg0, %c0_i32 : i32, i32
  }
  func.func @transform_1(%arg0: i32) -> (i32, i32) {
    %c0_i32 = arith.constant 0 : i32
    %c0_i32_0 = arith.constant 0 : i32
    %c0_i32_1 = arith.constant 0 : i32
    return %c0_i32, %c0_i32_0 : i32, i32
  }
  func.func @transform_2(%arg0: i32) -> (i32, i32) {
    %c0_i32 = arith.constant 0 : i32
    %c0_i32_0 = arith.constant 0 : i32
    %c0_i32_1 = arith.constant 0 : i32
    return %c0_i32, %c0_i32_0 : i32, i32
  }
  func.func @transform_3(%arg0: i32) -> (i32, i32, i32) {
    %c0_i32 = arith.constant 0 : i32
    %c0_i32_0 = arith.constant 0 : i32
    %c0_i32_1 = arith.constant 0 : i32
    %c0_i32_2 = arith.constant 0 : i32
    return %c0_i32, %c0_i32_0, %c0_i32_1 : i32, i32, i32
  }
  func.func @transform_4(%arg0: i32) -> (i32, i32, i32) {
    %c0_i32 = arith.constant 0 : i32
    %c0_i32_0 = arith.constant 0 : i32
    %c0_i32_1 = arith.constant 0 : i32
    %c0_i32_2 = arith.constant 0 : i32
    return %c0_i32, %c0_i32_0, %c0_i32_1 : i32, i32, i32
  }
  func.func @transform_5(%arg0: i32) -> (i32, i32) {
    %c0_i32 = arith.constant 0 : i32
    %c0_i32_0 = arith.constant 0 : i32
    %c0_i32_1 = arith.constant 0 : i32
    return %c0_i32, %c0_i32_0 : i32, i32
  }
  func.func @transform_6(%arg0: i32) -> (i32, i32) {
    %c0_i32 = arith.constant 0 : i32
    %c0_i32_0 = arith.constant 0 : i32
    %c0_i32_1 = arith.constant 0 : i32
    return %c0_i32, %c0_i32_0 : i32, i32
  }
  func.func @transform_7(%arg0: i32) -> (i32, i32) {
    %c0_i32 = arith.constant 0 : i32
    %c0_i32_0 = arith.constant 0 : i32
    return %arg0, %c0_i32 : i32, i32
  }
}

</mosaic_0001>

<llo_original>
// kernel: tpu_custom_call.1
$region0: #{tpu_custom_call.1}
  #allocation0 [shape = 'u32[]', space=smem, size = 0x4, offset = 0x4, fixed_abs, tag = 'smem constant byte address 0x4 - core index']
  #allocation1 [shape = 'u32[144,128]{1,0:T(1,128)}', space=vmem, size = 0x12000, scoped, tag = 'internal scratch']
  %s0 = inlined_call_operand.hbm [shape: f32[32,128], index: 0, kind: input, shape index: {}]
  %s1 = inlined_call_operand.hbm [shape: f32[128,128], index: 1, kind: input, shape index: {}]
  %s2 = inlined_call_operand.vmem [shape: f32[1,128], index: 2, kind: input, shape index: {}]
  %s3 = inlined_call_operand.hbm [shape: f32[2,128,128], index: 3, kind: input, shape index: {}]
  %s4 = inlined_call_operand.vmem [shape: f32[2,1,128], index: 4, kind: input, shape index: {}]
  %s5 = inlined_call_operand.hbm [shape: f32[128,128], index: 5, kind: input, shape index: {}]
  %s6 = inlined_call_operand.vmem [shape: f32[1,128], index: 6, kind: input, shape index: {}]
  %s7 = inlined_call_operand.hbm [shape: f32[32,128], index: 7, kind: output, shape index: {}]
  %s8 = sld [smem:[#allocation0]]
  $region54: #{tpu_custom_call.1} parent=0
    _
  %s10 = ssub.s32 1, %s8
  %s11 = scalar_select 0, %s10, %s8
  $region1: #{tpu_custom_call.1} parent=0
    #allocation2 [shape = 'u8[16384]{0}', space=vmem, size = 0x4000, scoped, tag = 'input window, operand 0, single buffered']
    #allocation3 [shape = 's32[1]{0}', space=sflag, size = 0x4, scoped, tag = 'scoped memory for tpu_custom_call.1']
    #allocation4 [shape = 's32[1]{0}', space=sflag, size = 0x4, scoped, tag = 'scoped memory for tpu_custom_call.1']
    #allocation5 [shape = 'u8[65536]{0}', space=vmem, size = 0x10000, scoped, tag = 'input window, operand 1, single buffered']
    #allocation6 [shape = 's32[1]{0}', space=sflag, size = 0x4, scoped, tag = 'scoped memory for tpu_custom_call.1']
    #allocation7 [shape = 'u8[131072]{0}', space=vmem, size = 0x20000, scoped, tag = 'input window, operand 3, single buffered']
    #allocation8 [shape = 'u8[65536]{0}', space=vmem, size = 0x10000, scoped, tag = 'input window, operand 5, single buffered']
    #allocation9 [shape = 's32[1]{0}', space=sflag, size = 0x4, scoped, tag = 'scoped memory for tpu_custom_call.1']
    #allocation10 [shape = 'u8[16384]{0}', space=vmem, size = 0x4000, scoped, tag = 'output window, operand 0, single buffered']
    %12 = vsyncpa [#allocation3], 0
    %13 = vsyncpa [#allocation6], 0
    %14 = vsyncpa [#allocation9], 0
    %15 = vsyncpa [#allocation4], 0
    // Predicated region
    $region2: #{tpu_custom_call.1} parent=1 // pred_check
      _
    $region3: #{tpu_custom_call.1} parent=1 // pred_check_branch
      %17 = sbr.rel (0) target = $region5
    $region4: #{tpu_custom_call.1} parent=1 // pred_region
      %s19 = ssub.s32 512, 512
      %20 = vsyncadd [#allocation3], %s19
      %s21 = sshll.u32 [#allocation2], 4
      %s22 = int_to_ptr.vmem [resolvable:$true] %s21
      %27 = dma.hbm_to_vmem [thread:$0]  %s0, 512, %s22, [#allocation3], 128, 128, 8
    $region5: #{tpu_custom_call.1} parent=1 // pred_fallthru
      _
    // Predicated region
    $region6: #{tpu_custom_call.1} parent=1 // pred_check
      _
    $region7: #{tpu_custom_call.1} parent=1 // pred_check_branch
      %29 = sbr.rel (0) target = $region9
    $region8: #{tpu_custom_call.1} parent=1 // pred_region
      %s31 = ssub.s32 2048, 2048
      %32 = vsyncadd [#allocation6], %s31
      %s33 = sshll.u32 [#allocation5], 4
      %s34 = int_to_ptr.vmem [resolvable:$true] %s33
      %39 = dma.hbm_to_vmem [thread:$0]  %s1, 2048, %s34, [#allocation6], 128, 128, 8
    $region9: #{tpu_custom_call.1} parent=1 // pred_fallthru
      _
    // Predicated region
    $region10: #{tpu_custom_call.1} parent=1 // pred_check
      _
    $region11: #{tpu_custom_call.1} parent=1 // pred_check_branch
      %41 = sbr.rel (0) target = $region13
    $region12: #{tpu_custom_call.1} parent=1 // pred_region
      _
    $region13: #{tpu_custom_call.1} parent=1 // pred_fallthru
      _
    // Predicated region
    $region14: #{tpu_custom_call.1} parent=1 // pred_check
      _
    $region15: #{tpu_custom_call.1} parent=1 // pred_check_branch
      %43 = sbr.rel (0) target = $region17
    $region16: #{tpu_custom_call.1} parent=1 // pred_region
      %s45 = ssub.s32 4096, 4096
      %46 = vsyncadd [#allocation6], %s45
      %s47 = sshll.u32 [#allocation7], 4
      %s48 = int_to_ptr.vmem [resolvable:$true] %s47
      %53 = dma.hbm_to_vmem [thread:$0]  %s3, 4096, %s48, [#allocation6], 128, 128, 8
    $region17: #{tpu_custom_call.1} parent=1 // pred_fallthru
      _
    // Predicated region
    $region18: #{tpu_custom_call.1} parent=1 // pred_check
      _
    $region19: #{tpu_custom_call.1} parent=1 // pred_check_branch
      %55 = sbr.rel (0) target = $region21
    $region20: #{tpu_custom_call.1} parent=1 // pred_region
      _
    $region21: #{tpu_custom_call.1} parent=1 // pred_fallthru
      _
    // Predicated region
    $region22: #{tpu_custom_call.1} parent=1 // pred_check
      _
    $region23: #{tpu_custom_call.1} parent=1 // pred_check_branch
      %57 = sbr.rel (0) target = $region25
    $region24: #{tpu_custom_call.1} parent=1 // pred_region
      %s59 = ssub.s32 2048, 2048
      %60 = vsyncadd [#allocation9], %s59
      %s61 = sshll.u32 [#allocation8], 4
      %s62 = int_to_ptr.vmem [resolvable:$true] %s61
      %67 = dma.hbm_to_vmem [thread:$0]  %s5, 2048, %s62, [#allocation9], 128, 128, 8
    $region25: #{tpu_custom_call.1} parent=1 // pred_fallthru
      _
    // Predicated region
    $region26: #{tpu_custom_call.1} parent=1 // pred_check
      _
    $region27: #{tpu_custom_call.1} parent=1 // pred_check_branch
      %69 = sbr.rel (0) target = $region29
    $region28: #{tpu_custom_call.1} parent=1 // pred_region
      _
    $region29: #{tpu_custom_call.1} parent=1 // pred_fallthru
      _
    // Predicated region
    $region30: #{tpu_custom_call.1} parent=1 // pred_check
      _
    $region31: #{tpu_custom_call.1} parent=1 // pred_check_branch
      %71 = sbr.rel (0) target = $region33
    $region32: #{tpu_custom_call.1} parent=1 // pred_region
      %72 = dma.done [#allocation3], 512
    $region33: #{tpu_custom_call.1} parent=1 // pred_fallthru
      _
    // Predicated region
    $region34: #{tpu_custom_call.1} parent=1 // pred_check
      _
    $region35: #{tpu_custom_call.1} parent=1 // pred_check_branch
      %74 = sbr.rel (0) target = $region37
    $region36: #{tpu_custom_call.1} parent=1 // pred_region
      %75 = dma.done [#allocation6], 2048
    $region37: #{tpu_custom_call.1} parent=1 // pred_fallthru
      _
    // Predicated region
    $region38: #{tpu_custom_call.1} parent=1 // pred_check
      _
    $region39: #{tpu_custom_call.1} parent=1 // pred_check_branch
      %77 = sbr.rel (0) target = $region41
    $region40: #{tpu_custom_call.1} parent=1 // pred_region
      %78 = dma.done [#allocation6], 4096
    $region41: #{tpu_custom_call.1} parent=1 // pred_fallthru
      _
    // Predicated region
    $region42: #{tpu_custom_call.1} parent=1 // pred_check
      _
    $region43: #{tpu_custom_call.1} parent=1 // pred_check_branch
      %80 = sbr.rel (0) target = $region45
    $region44: #{tpu_custom_call.1} parent=1 // pred_region
      %81 = dma.done [#allocation9], 2048
    $region45: #{tpu_custom_call.1} parent=1 // pred_fallthru
      _
    %v82 = vld [vmem:[#allocation2] sm:$0xff]
    %v83 = vld [vmem:[#allocation2 + $0x8] sm:$0xff]
    %v84 = vld [vmem:[#allocation2 + $0x10] sm:$0xff]
    %v85 = vld [vmem:[#allocation2 + $0x18] sm:$0xff]
    %v86 = vld [vmem:[#allocation5] sm:$0xff]
    %v87 = vld [vmem:[#allocation5 + $0x8] sm:$0xff]
    %v88 = vld [vmem:[#allocation5 + $0x10] sm:$0xff]
    %v89 = vld [vmem:[#allocation5 + $0x18] sm:$0xff]
    %v90 = vld [vmem:[#allocation5 + $0x20] sm:$0xff]
    %v91 = vld [vmem:[#allocation5 + $0x28] sm:$0xff]
    %v92 = vld [vmem:[#allocation5 + $0x30] sm:$0xff]
    %v93 = vld [vmem:[#allocation5 + $0x38] sm:$0xff]
    %v94 = vld [vmem:[#allocation5 + $0x40] sm:$0xff]
    %v95 = vld [vmem:[#allocation5 + $0x48] sm:$0xff]
    %v96 = vld [vmem:[#allocation5 + $0x50] sm:$0xff]
    %v97 = vld [vmem:[#allocation5 + $0x58] sm:$0xff]
    %v98 = vld [vmem:[#allocation5 + $0x60] sm:$0xff]
    %v99 = vld [vmem:[#allocation5 + $0x68] sm:$0xff]
    %v100 = vld [vmem:[#allocation5 + $0x70] sm:$0xff]
    %v101 = vld [vmem:[#allocation5 + $0x78] sm:$0xff]
    %v102 = vld [vmem:[%s2] sm:$0x1]
    %v104 = vlaneseq
    %v105 = vshrl.u32 %v104, 7
    %v106 = vsub.s32 0, %v105
    %v107 = vrot.slane %v102, %v106
    %109 = vmatprep.subr.mxu0 0.0
    %110 = vmatpush1.msra.mxu0 %v86
    %111 = vmatprep.subr.mxu0 0.0
    %112 = vmatpush1.msra.mxu0 %v87
    %113 = vmatprep.subr.mxu0 0.0
    %114 = vmatpush1.msra.mxu0 %v88
    %115 = vmatprep.subr.mxu0 0.0
    %116 = vmatpush1.msra.mxu0 %v89
    %117 = vmatprep.subr.mxu0 0.0
    %118 = vmatpush1.msra.mxu0 %v90
    %119 = vmatprep.subr.mxu0 0.0
    %120 = vmatpush1.msra.mxu0 %v91
    %121 = vmatprep.subr.mxu0 0.0
    %122 = vmatpush1.msra.mxu0 %v92
    %123 = vmatprep.subr.mxu0 0.0
    %124 = vmatpush1.msra.mxu0 %v93
    %125 = vmatprep.subr.mxu0 0.0
    %126 = vmatpush1.msra.mxu0 %v94
    %127 = vmatprep.subr.mxu0 0.0
    %128 = vmatpush1.msra.mxu0 %v95
    %129 = vmatprep.subr.mxu0 0.0
    %130 = vmatpush1.msra.mxu0 %v96
    %131 = vmatprep.subr.mxu0 0.0
    %132 = vmatpush1.msra.mxu0 %v97
    %133 = vmatprep.subr.mxu0 0.0
    %134 = vmatpush1.msra.mxu0 %v98
    %135 = vmatprep.subr.mxu0 0.0
    %136 = vmatpush1.msra.mxu0 %v99
    %137 = vmatprep.subr.mxu0 0.0
    %138 = vmatpush1.msra.mxu0 %v100
    %139 = vmatprep.subr.mxu0 0.0
    %140 = vmatpush1.msra.mxu0 %v101
    %141 = vmatprep.subr.mxu0 0.0
    %142 = vmatpush1.msra.mxu0 0.0
    %143 = vmatprep.subr.mxu0 0.0
    %144 = vmatpush1.msra.mxu0 0.0
    %145 = vmatprep.subr.mxu0 0.0
    %146 = vmatpush1.msra.mxu0 0.0
    %147 = vmatprep.subr.mxu0 0.0
    %148 = vmatpush1.msra.mxu0 0.0
    %149 = vmatprep.subr.mxu0 0.0
    %150 = vmatpush1.msra.mxu0 0.0
    %151 = vmatprep.subr.mxu0 0.0
    %152 = vmatpush1.msra.mxu0 0.0
    %153 = vmatprep.subr.mxu0 0.0
    %154 = vmatpush1.msra.mxu0 0.0
    %155 = vmatprep.subr.mxu0 0.0
    %156 = vmatpush1.msra.mxu0 0.0
    %157 = vmatprep.subr.mxu0 0.0
    %158 = vmatpush1.msra.mxu0 0.0
    %159 = vmatprep.subr.mxu0 0.0
    %160 = vmatpush1.msra.mxu0 0.0
    %161 = vmatprep.subr.mxu0 0.0
    %162 = vmatpush1.msra.mxu0 0.0
    %163 = vmatprep.subr.mxu0 0.0
    %164 = vmatpush1.msra.mxu0 0.0
    %165 = vmatprep.subr.mxu0 0.0
    %166 = vmatpush1.msra.mxu0 0.0
    %167 = vmatprep.subr.mxu0 0.0
    %168 = vmatpush1.msra.mxu0 0.0
    %169 = vmatprep.subr.mxu0 0.0
    %170 = vmatpush1.msra.mxu0 0.0
    %171 = vmatprep.subr.mxu0 0.0
    %172 = vmatpush1.msra.mxu0 0.0
    %173 = vmatprep.mubr.f32.mxu0 0.0
    %174 = vmatmul.mubr.f32.gmra.mrb[0].mxu0 %v82
    %v175 = vpop.f32.mrb[0].mxu0
    %v176 = vadd.f32 %v107, %v175
    %v177 = vpop.f32.mrb[0].mxu0
    %178 = vmatprep.mubr.f32.mxu0 0.0
    %179 = vmatmul.mubr.f32.gmra.mrb[0].mxu0 %v83
    %v180 = vpop.f32.mrb[0].mxu0
    %v181 = vadd.f32 %v107, %v180
    %v182 = vpop.f32.mrb[0].mxu0
    %183 = vmatprep.mubr.f32.mxu0 0.0
    %184 = vmatmul.mubr.f32.gmra.mrb[0].mxu0 %v84
    %v185 = vpop.f32.mrb[0].mxu0
    %v186 = vadd.f32 %v107, %v185
    %v187 = vpop.f32.mrb[0].mxu0
    %188 = vmatprep.mubr.f32.mxu0 0.0
    %189 = vmatmul.mubr.f32.gmra.mrb[0].mxu0 %v85
    %v190 = vpop.f32.mrb[0].mxu0
    %v191 = vadd.f32 %v107, %v190
    %v192 = vpop.f32.mrb[0].mxu0
    %193 = vdwg.mxu0
    %v194 = vmax.f32 %v176, 0.0
    %v195 = vmax.f32 %v181, 0.0
    %v196 = vmax.f32 %v186, 0.0
    %v197 = vmax.f32 %v191, 0.0
    %v198 = vld [vmem:[#allocation7] sm:$0xff]
    %v199 = vld [vmem:[#allocation7 + $0x8] sm:$0xff]
    %v200 = vld [vmem:[#allocation7 + $0x10] sm:$0xff]
    %v201 = vld [vmem:[#allocation7 + $0x18] sm:$0xff]
    %v202 = vld [vmem:[#allocation7 + $0x20] sm:$0xff]
    %v203 = vld [vmem:[#allocation7 + $0x28] sm:$0xff]
    %v204 = vld [vmem:[#allocation7 + $0x30] sm:$0xff]
    %v205 = vld [vmem:[#allocation7 + $0x38] sm:$0xff]
    %v206 = vld [vmem:[#allocation7 + $0x40] sm:$0xff]
    %v207 = vld [vmem:[#allocation7 + $0x48] sm:$0xff]
    %v208 = vld [vmem:[#allocation7 + $0x50] sm:$0xff]
    %v209 = vld [vmem:[#allocation7 + $0x58] sm:$0xff]
    %v210 = vld [vmem:[#allocation7 + $0x60] sm:$0xff]
    %v211 = vld [vmem:[#allocation7 + $0x68] sm:$0xff]
    %v212 = vld [vmem:[#allocation7 + $0x70] sm:$0xff]
    %v213 = vld [vmem:[#allocation7 + $0x78] sm:$0xff]
    %v214 = vld [vmem:[%s4] sm:$0x1]
    %v216 = vlaneseq
    %v217 = vshrl.u32 %v216, 7
    %v218 = vsub.s32 0, %v217
    %v219 = vrot.slane %v214, %v218
    %221 = vmatprep.subr.mxu0 0.0
    %222 = vmatpush1.msra.mxu0 %v198
    %223 = vmatprep.subr.mxu0 0.0
    %224 = vmatpush1.msra.mxu0 %v199
    %225 = vmatprep.subr.mxu0 0.0
    %226 = vmatpush1.msra.mxu0 %v200
    %227 = vmatprep.subr.mxu0 0.0
    %228 = vmatpush1.msra.mxu0 %v201
    %229 = vmatprep.subr.mxu0 0.0
    %230 = vmatpush1.msra.mxu0 %v202
    %231 = vmatprep.subr.mxu0 0.0
    %232 = vmatpush1.msra.mxu0 %v203
    %233 = vmatprep.subr.mxu0 0.0
    %234 = vmatpush1.msra.mxu0 %v204
    %235 = vmatprep.subr.mxu0 0.0
    %236 = vmatpush1.msra.mxu0 %v205
    %237 = vmatprep.subr.mxu0 0.0
    %238 = vmatpush1.msra.mxu0 %v206
    %239 = vmatprep.subr.mxu0 0.0
    %240 = vmatpush1.msra.mxu0 %v207
    %241 = vmatprep.subr.mxu0 0.0
    %242 = vmatpush1.msra.mxu0 %v208
    %243 = vmatprep.subr.mxu0 0.0
    %244 = vmatpush1.msra.mxu0 %v209
    %245 = vmatprep.subr.mxu0 0.0
    %246 = vmatpush1.msra.mxu0 %v210
    %247 = vmatprep.subr.mxu0 0.0
    %248 = vmatpush1.msra.mxu0 %v211
    %249 = vmatprep.subr.mxu0 0.0
    %250 = vmatpush1.msra.mxu0 %v212
    %251 = vmatprep.subr.mxu0 0.0
    %252 = vmatpush1.msra.mxu0 %v213
    %253 = vmatprep.subr.mxu0 0.0
    %254 = vmatpush1.msra.mxu0 0.0
    %255 = vmatprep.subr.mxu0 0.0
    %256 = vmatpush1.msra.mxu0 0.0
    %257 = vmatprep.subr.mxu0 0.0
    %258 = vmatpush1.msra.mxu0 0.0
    %259 = vmatprep.subr.mxu0 0.0
    %260 = vmatpush1.msra.mxu0 0.0
    %261 = vmatprep.subr.mxu0 0.0
    %262 = vmatpush1.msra.mxu0 0.0
    %263 = vmatprep.subr.mxu0 0.0
    %264 = vmatpush1.msra.mxu0 0.0
    %265 = vmatprep.subr.mxu0 0.0
    %266 = vmatpush1.msra.mxu0 0.0
    %267 = vmatprep.subr.mxu0 0.0
    %268 = vmatpush1.msra.mxu0 0.0
    %269 = vmatprep.subr.mxu0 0.0
    %270 = vmatpush1.msra.mxu0 0.0
    %271 = vmatprep.subr.mxu0 0.0
    %272 = vmatpush1.msra.mxu0 0.0
    %273 = vmatprep.subr.mxu0 0.0
    %274 = vmatpush1.msra.mxu0 0.0
    %275 = vmatprep.subr.mxu0 0.0
    %276 = vmatpush1.msra.mxu0 0.0
    %277 = vmatprep.subr.mxu0 0.0
    %278 = vmatpush1.msra.mxu0 0.0
    %279 = vmatprep.subr.mxu0 0.0
    %280 = vmatpush1.msra.mxu0 0.0
    %281 = vmatprep.subr.mxu0 0.0
    %282 = vmatpush1.msra.mxu0 0.0
    %283 = vmatprep.subr.mxu0 0.0
    %284 = vmatpush1.msra.mxu0 0.0
    %285 = vmatprep.mubr.f32.mxu0 0.0
    %286 = vmatmul.mubr.f32.gmra.mrb[0].mxu0 %v194
    %v287 = vpop.f32.mrb[0].mxu0
    %v288 = vadd.f32 %v219, %v287
    %v289 = vpop.f32.mrb[0].mxu0
    %290 = vmatprep.mubr.f32.mxu0 0.0
    %291 = vmatmul.mubr.f32.gmra.mrb[0].mxu0 %v195
    %v292 = vpop.f32.mrb[0].mxu0
    %v293 = vadd.f32 %v219, %v292
    %v294 = vpop.f32.mrb[0].mxu0
    %295 = vmatprep.mubr.f32.mxu0 0.0
    %296 = vmatmul.mubr.f32.gmra.mrb[0].mxu0 %v196
    %v297 = vpop.f32.mrb[0].mxu0
    %v298 = vadd.f32 %v219, %v297
    %v299 = vpop.f32.mrb[0].mxu0
    %300 = vmatprep.mubr.f32.mxu0 0.0
    %301 = vmatmul.mubr.f32.gmra.mrb[0].mxu0 %v197
    %v302 = vpop.f32.mrb[0].mxu0
    %v303 = vadd.f32 %v219, %v302
    %v304 = vpop.f32.mrb[0].mxu0
    %305 = vdwg.mxu0
    %v306 = vmax.f32 %v288, 0.0
    %v307 = vmax.f32 %v293, 0.0
    %v308 = vmax.f32 %v298, 0.0
    %v309 = vmax.f32 %v303, 0.0
    %s310 = scalar_lea.vmem [#allocation7], 128
    %v311 = vld [vmem:[%s310] sm:$0xff]
    %v312 = vld [vmem:[%s310 + $0x8] sm:$0xff]
    %v313 = vld [vmem:[%s310 + $0x10] sm:$0xff]
    %v314 = vld [vmem:[%s310 + $0x18] sm:$0xff]
    %v315 = vld [vmem:[%s310 + $0x20] sm:$0xff]
    %v316 = vld [vmem:[%s310 + $0x28] sm:$0xff]
    %v317 = vld [vmem:[%s310 + $0x30] sm:$0xff]
    %v318 = vld [vmem:[%s310 + $0x38] sm:$0xff]
    %v319 = vld [vmem:[%s310 + $0x40] sm:$0xff]
    %v320 = vld [vmem:[%s310 + $0x48] sm:$0xff]
    %v321 = vld [vmem:[%s310 + $0x50] sm:$0xff]
    %v322 = vld [vmem:[%s310 + $0x58] sm:$0xff]
    %v323 = vld [vmem:[%s310 + $0x60] sm:$0xff]
    %v324 = vld [vmem:[%s310 + $0x68] sm:$0xff]
    %v325 = vld [vmem:[%s310 + $0x70] sm:$0xff]
    %v326 = vld [vmem:[%s310 + $0x78] sm:$0xff]
    %s327 = scalar_lea.vmem %s4, 1
    %v328 = vld [vmem:[%s327] sm:$0x1]
    %v330 = vlaneseq
    %v331 = vshrl.u32 %v330, 7
    %v332 = vsub.s32 0, %v331
    %v333 = vrot.slane %v328, %v332
    %335 = vmatprep.subr.mxu0 0.0
    %336 = vmatpush1.msra.mxu0 %v311
    %337 = vmatprep.subr.mxu0 0.0
    %338 = vmatpush1.msra.mxu0 %v312
    %339 = vmatprep.subr.mxu0 0.0
    %340 = vmatpush1.msra.mxu0 %v313
    %341 = vmatprep.subr.mxu0 0.0
    %342 = vmatpush1.msra.mxu0 %v314
    %343 = vmatprep.subr.mxu0 0.0
    %344 = vmatpush1.msra.mxu0 %v315
    %345 = vmatprep.subr.mxu0 0.0
    %346 = vmatpush1.msra.mxu0 %v316
    %347 = vmatprep.subr.mxu0 0.0
    %348 = vmatpush1.msra.mxu0 %v317
    %349 = vmatprep.subr.mxu0 0.0
    %350 = vmatpush1.msra.mxu0 %v318
    %351 = vmatprep.subr.mxu0 0.0
    %352 = vmatpush1.msra.mxu0 %v319
    %353 = vmatprep.subr.mxu0 0.0
    %354 = vmatpush1.msra.mxu0 %v320
    %355 = vmatprep.subr.mxu0 0.0
    %356 = vmatpush1.msra.mxu0 %v321
    %357 = vmatprep.subr.mxu0 0.0
    %358 = vmatpush1.msra.mxu0 %v322
    %359 = vmatprep.subr.mxu0 0.0
    %360 = vmatpush1.msra.mxu0 %v323
    %361 = vmatprep.subr.mxu0 0.0
    %362 = vmatpush1.msra.mxu0 %v324
    %363 = vmatprep.subr.mxu0 0.0
    %364 = vmatpush1.msra.mxu0 %v325
    %365 = vmatprep.subr.mxu0 0.0
    %366 = vmatpush1.msra.mxu0 %v326
    %367 = vmatprep.subr.mxu0 0.0
    %368 = vmatpush1.msra.mxu0 0.0
    %369 = vmatprep.subr.mxu0 0.0
    %370 = vmatpush1.msra.mxu0 0.0
    %371 = vmatprep.subr.mxu0 0.0
    %372 = vmatpush1.msra.mxu0 0.0
    %373 = vmatprep.subr.mxu0 0.0
    %374 = vmatpush1.msra.mxu0 0.0
    %375 = vmatprep.subr.mxu0 0.0
    %376 = vmatpush1.msra.mxu0 0.0
    %377 = vmatprep.subr.mxu0 0.0
    %378 = vmatpush1.msra.mxu0 0.0
    %379 = vmatprep.subr.mxu0 0.0
    %380 = vmatpush1.msra.mxu0 0.0
    %381 = vmatprep.subr.mxu0 0.0
    %382 = vmatpush1.msra.mxu0 0.0
    %383 = vmatprep.subr.mxu0 0.0
    %384 = vmatpush1.msra.mxu0 0.0
    %385 = vmatprep.subr.mxu0 0.0
    %386 = vmatpush1.msra.mxu0 0.0
    %387 = vmatprep.subr.mxu0 0.0
    %388 = vmatpush1.msra.mxu0 0.0
    %389 = vmatprep.subr.mxu0 0.0
    %390 = vmatpush1.msra.mxu0 0.0
    %391 = vmatprep.subr.mxu0 0.0
    %392 = vmatpush1.msra.mxu0 0.0
    %393 = vmatprep.subr.mxu0 0.0
    %394 = vmatpush1.msra.mxu0 0.0
    %395 = vmatprep.subr.mxu0 0.0
    %396 = vmatpush1.msra.mxu0 0.0
    %397 = vmatprep.subr.mxu0 0.0
    %398 = vmatpush1.msra.mxu0 0.0
    %399 = vmatprep.mubr.f32.mxu0 0.0
    %400 = vmatmul.mubr.f32.gmra.mrb[0].mxu0 %v306
    %v401 = vpop.f32.mrb[0].mxu0
    %v402 = vadd.f32 %v333, %v401
    %v403 = vpop.f32.mrb[0].mxu0
    %404 = vmatprep.mubr.f32.mxu0 0.0
    %405 = vmatmul.mubr.f32.gmra.mrb[0].mxu0 %v307
    %v406 = vpop.f32.mrb[0].mxu0
    %v407 = vadd.f32 %v333, %v406
    %v408 = vpop.f32.mrb[0].mxu0
    %409 = vmatprep.mubr.f32.mxu0 0.0
    %410 = vmatmul.mubr.f32.gmra.mrb[0].mxu0 %v308
    %v411 = vpop.f32.mrb[0].mxu0
    %v412 = vadd.f32 %v333, %v411
    %v413 = vpop.f32.mrb[0].mxu0
    %414 = vmatprep.mubr.f32.mxu0 0.0
    %415 = vmatmul.mubr.f32.gmra.mrb[0].mxu0 %v309
    %v416 = vpop.f32.mrb[0].mxu0
    %v417 = vadd.f32 %v333, %v416
    %v418 = vpop.f32.mrb[0].mxu0
    %419 = vdwg.mxu0
    %v420 = vmax.f32 %v402, 0.0
    %v421 = vmax.f32 %v407, 0.0
    %v422 = vmax.f32 %v412, 0.0
    %v423 = vmax.f32 %v417, 0.0
    %v424 = vld [vmem:[#allocation8] sm:$0xff]
    %v425 = vld [vmem:[#allocation8 + $0x8] sm:$0xff]
    %v426 = vld [vmem:[#allocation8 + $0x10] sm:$0xff]
    %v427 = vld [vmem:[#allocation8 + $0x18] sm:$0xff]
    %v428 = vld [vmem:[#allocation8 + $0x20] sm:$0xff]
    %v429 = vld [vmem:[#allocation8 + $0x28] sm:$0xff]
    %v430 = vld [vmem:[#allocation8 + $0x30] sm:$0xff]
    %v431 = vld [vmem:[#allocation8 + $0x38] sm:$0xff]
    %v432 = vld [vmem:[#allocation8 + $0x40] sm:$0xff]
    %v433 = vld [vmem:[#allocation8 + $0x48] sm:$0xff]
    %v434 = vld [vmem:[#allocation8 + $0x50] sm:$0xff]
    %v435 = vld [vmem:[#allocation8 + $0x58] sm:$0xff]
    %v436 = vld [vmem:[#allocation8 + $0x60] sm:$0xff]
    %v437 = vld [vmem:[#allocation8 + $0x68] sm:$0xff]
    %v438 = vld [vmem:[#allocation8 + $0x70] sm:$0xff]
    %v439 = vld [vmem:[#allocation8 + $0x78] sm:$0xff]
    %v440 = vld [vmem:[%s6] sm:$0x1]
    %v442 = vlaneseq
    %v443 = vshrl.u32 %v442, 7
    %v444 = vsub.s32 0, %v443
    %v445 = vrot.slane %v440, %v444
    %447 = vmatprep.subr.mxu0 0.0
    %448 = vmatpush1.msra.mxu0 %v424
    %449 = vmatprep.subr.mxu0 0.0
    %450 = vmatpush1.msra.mxu0 %v425
    %451 = vmatprep.subr.mxu0 0.0
    %452 = vmatpush1.msra.mxu0 %v426
    %453 = vmatprep.subr.mxu0 0.0
    %454 = vmatpush1.msra.mxu0 %v427
    %455 = vmatprep.subr.mxu0 0.0
    %456 = vmatpush1.msra.mxu0 %v428
    %457 = vmatprep.subr.mxu0 0.0
    %458 = vmatpush1.msra.mxu0 %v429
    %459 = vmatprep.subr.mxu0 0.0
    %460 = vmatpush1.msra.mxu0 %v430
    %461 = vmatprep.subr.mxu0 0.0
    %462 = vmatpush1.msra.mxu0 %v431
    %463 = vmatprep.subr.mxu0 0.0
    %464 = vmatpush1.msra.mxu0 %v432
    %465 = vmatprep.subr.mxu0 0.0
    %466 = vmatpush1.msra.mxu0 %v433
    %467 = vmatprep.subr.mxu0 0.0
    %468 = vmatpush1.msra.mxu0 %v434
    %469 = vmatprep.subr.mxu0 0.0
    %470 = vmatpush1.msra.mxu0 %v435
    %471 = vmatprep.subr.mxu0 0.0
    %472 = vmatpush1.msra.mxu0 %v436
    %473 = vmatprep.subr.mxu0 0.0
    %474 = vmatpush1.msra.mxu0 %v437
    %475 = vmatprep.subr.mxu0 0.0
    %476 = vmatpush1.msra.mxu0 %v438
    %477 = vmatprep.subr.mxu0 0.0
    %478 = vmatpush1.msra.mxu0 %v439
    %479 = vmatprep.subr.mxu0 0.0
    %480 = vmatpush1.msra.mxu0 0.0
    %481 = vmatprep.subr.mxu0 0.0
    %482 = vmatpush1.msra.mxu0 0.0
    %483 = vmatprep.subr.mxu0 0.0
    %484 = vmatpush1.msra.mxu0 0.0
    %485 = vmatprep.subr.mxu0 0.0
    %486 = vmatpush1.msra.mxu0 0.0
    %487 = vmatprep.subr.mxu0 0.0
    %488 = vmatpush1.msra.mxu0 0.0
    %489 = vmatprep.subr.mxu0 0.0
    %490 = vmatpush1.msra.mxu0 0.0
    %491 = vmatprep.subr.mxu0 0.0
    %492 = vmatpush1.msra.mxu0 0.0
    %493 = vmatprep.subr.mxu0 0.0
    %494 = vmatpush1.msra.mxu0 0.0
    %495 = vmatprep.subr.mxu0 0.0
    %496 = vmatpush1.msra.mxu0 0.0
    %497 = vmatprep.subr.mxu0 0.0
    %498 = vmatpush1.msra.mxu0 0.0
    %499 = vmatprep.subr.mxu0 0.0
    %500 = vmatpush1.msra.mxu0 0.0
    %501 = vmatprep.subr.mxu0 0.0
    %502 = vmatpush1.msra.mxu0 0.0
    %503 = vmatprep.subr.mxu0 0.0
    %504 = vmatpush1.msra.mxu0 0.0
    %505 = vmatprep.subr.mxu0 0.0
    %506 = vmatpush1.msra.mxu0 0.0
    %507 = vmatprep.subr.mxu0 0.0
    %508 = vmatpush1.msra.mxu0 0.0
    %509 = vmatprep.subr.mxu0 0.0
    %510 = vmatpush1.msra.mxu0 0.0
    %511 = vmatprep.mubr.f32.mxu0 0.0
    %512 = vmatmul.mubr.f32.gmra.mrb[0].mxu0 %v420
    %v513 = vpop.f32.mrb[0].mxu0
    %v514 = vadd.f32 %v445, %v513
    %v515 = vpop.f32.mrb[0].mxu0
    %516 = vmatprep.mubr.f32.mxu0 0.0
    %517 = vmatmul.mubr.f32.gmra.mrb[0].mxu0 %v421
    %v518 = vpop.f32.mrb[0].mxu0
    %v519 = vadd.f32 %v445, %v518
    %v520 = vpop.f32.mrb[0].mxu0
    %521 = vmatprep.mubr.f32.mxu0 0.0
    %522 = vmatmul.mubr.f32.gmra.mrb[0].mxu0 %v422
    %v523 = vpop.f32.mrb[0].mxu0
    %v524 = vadd.f32 %v445, %v523
    %v525 = vpop.f32.mrb[0].mxu0
    %526 = vmatprep.mubr.f32.mxu0 0.0
    %527 = vmatmul.mubr.f32.gmra.mrb[0].mxu0 %v423
    %v528 = vpop.f32.mrb[0].mxu0
    %v529 = vadd.f32 %v445, %v528
    %v530 = vpop.f32.mrb[0].mxu0
    %531 = vdwg.mxu0
    %532 = vst [vmem:[#allocation10] sm:$0xff] %v514
    %533 = vst [vmem:[#allocation10 + $0x8] sm:$0xff] %v519
    %534 = vst [vmem:[#allocation10 + $0x10] sm:$0xff] %v524
    %535 = vst [vmem:[#allocation10 + $0x18] sm:$0xff] %v529
    // Predicated region
    $region46: #{tpu_custom_call.1} parent=1 // pred_check
      _
    $region47: #{tpu_custom_call.1} parent=1 // pred_check_branch
      %537 = sbr.rel (0) target = $region49
    $region48: #{tpu_custom_call.1} parent=1 // pred_region
      %s539 = ssub.s32 512, 512
      %540 = vsyncadd [#allocation4], %s539
      %s541 = sshll.u32 [#allocation10], 4
      %s542 = int_to_ptr.vmem [resolvable:$true] %s541
      %547 = dma.vmem_to_hbm [thread:$0]  %s542, 512, %s7, [#allocation4], 128, 128, 8
    $region49: #{tpu_custom_call.1} parent=1 // pred_fallthru
      _
    // Predicated region
    $region50: #{tpu_custom_call.1} parent=1 // pred_check
      _
    $region51: #{tpu_custom_call.1} parent=1 // pred_check_branch
      %549 = sbr.rel (0) target = $region53
    $region52: #{tpu_custom_call.1} parent=1 // pred_region
      %550 = dma.done [#allocation4], 512
    $region53: #{tpu_custom_call.1} parent=1 // pred_fallthru
      _
    %551 = vsyncpa [#allocation3], 1
    %552 = vsyncpa [#allocation6], 1
    %553 = vsyncpa [#allocation9], 1
    %554 = vsyncpa [#allocation4], 1

// kernel: tpu_custom_call.1
$region0: #{tpu_custom_call.1}
  #allocation0 [shape = 'u32[]', space=smem, size = 0x4, offset = 0x4, fixed_abs, tag = 'smem constant byte address 0x4 - core index']
  #allocation1 [shape = 'u32[144,128]{1,0:T(1,128)}', space=vmem, size = 0x12000, scoped, tag = 'internal scratch']
  %s0 = inlined_call_operand.hbm [shape: f32[32,128], index: 0, kind: input, shape index: {}]
  %s1 = inlined_call_operand.hbm [shape: f32[128,128], index: 1, kind: input, shape index: {}]
  %s2 = inlined_call_operand.vmem [shape: f32[1,128], index: 2, kind: input, shape index: {}]
  %s3 = inlined_call_operand.hbm [shape: f32[2,128,128], index: 3, kind: input, shape index: {}]
  %s4 = inlined_call_operand.vmem [shape: f32[2,1,128], index: 4, kind: input, shape index: {}]
  %s5 = inlined_call_operand.hbm [shape: f32[128,128], index: 5, kind: input, shape index: {}]
  %s6 = inlined_call_operand.vmem [shape: f32[1,128], index: 6, kind: input, shape index: {}]
  %s7 = inlined_call_operand.hbm [shape: f32[32,128], index: 7, kind: output, shape index: {}]
  %s8 = sld [smem:[#allocation0]]
  $region54: #{tpu_custom_call.1} parent=0
    _
  %s10 = ssub.s32 1, %s8
  %s11 = scalar_select 0, %s10, %s8
  $region1: #{tpu_custom_call.1} parent=0
    #allocation2 [shape = 'u8[16384]{0}', space=vmem, size = 0x4000, scoped, tag = 'input window, operand 0, single buffered']
    #allocation3 [shape = 's32[1]{0}', space=sflag, size = 0x4, scoped, tag = 'scoped memory for tpu_custom_call.1']
    #allocation4 [shape = 's32[1]{0}', space=sflag, size = 0x4, scoped, tag = 'scoped memory for tpu_custom_call.1']
    #allocation5 [shape = 'u8[65536]{0}', space=vmem, size = 0x10000, scoped, tag = 'input window, operand 1, single buffered']
    #allocation6 [shape = 's32[1]{0}', space=sflag, size = 0x4, scoped, tag = 'scoped memory for tpu_custom_call.1']
    #allocation7 [shape = 'u8[131072]{0}', space=vmem, size = 0x20000, scoped, tag = 'input window, operand 3, single buffered']
    #allocation8 [shape = 'u8[65536]{0}', space=vmem, size = 0x10000, scoped, tag = 'input window, operand 5, single buffered']
    #allocation9 [shape = 's32[1]{0}', space=sflag, size = 0x4, scoped, tag = 'scoped memory for tpu_custom_call.1']
    #allocation10 [shape = 'u8[16384]{0}', space=vmem, size = 0x4000, scoped, tag = 'output window, operand 0, single buffered']
    %12 = vsyncpa [#allocation3], 0
    %13 = vsyncpa [#allocation6], 0
    %14 = vsyncpa [#allocation9], 0
    %15 = vsyncpa [#allocation4], 0
    // Predicated region
    $region2: #{tpu_custom_call.1} parent=1 // pred_check
      _
    $region3: #{tpu_custom_call.1} parent=1 // pred_check_branch
      %17 = sbr.rel (0) target = $region5
    $region4: #{tpu_custom_call.1} parent=1 // pred_region
      %s19 = ssub.s32 512, 512
      %20 = vsyncadd [#allocation3], %s19
      %s21 = sshll.u32 [#allocation2], 4
      %s22 = int_to_ptr.vmem [resolvable:$true] %s21
      %27 = dma.hbm_to_vmem [thread:$0]  %s0, 512, %s22, [#allocation3], 128, 128, 8
    $region5: #{tpu_custom_call.1} parent=1 // pred_fallthru
      _
    // Predicated region
    $region6: #{tpu_custom_call.1} parent=1 // pred_check
      _
    $region7: #{tpu_custom_call.1} parent=1 // pred_check_branch
      %29 = sbr.rel (0) target = $region9
    $region8: #{tpu_custom_call.1} parent=1 // pred_region
      %s31 = ssub.s32 2048, 2048
      %32 = vsyncadd [#allocation6], %s31
      %s33 = sshll.u32 [#allocation5], 4
      %s34 = int_to_ptr.vmem [resolvable:$true] %s33
      %39 = dma.hbm_to_vmem [thread:$0]  %s1, 2048, %s34, [#allocation6], 128, 128, 8
    $region9: #{tpu_custom_call.1} parent=1 // pred_fallthru
      _
    // Predicated region
    $region10: #{tpu_custom_call.1} parent=1 // pred_check
      _
    $region11: #{tpu_custom_call.1} parent=1 // pred_check_branch
      %41 = sbr.rel (0) target = $region13
    $region12: #{tpu_custom_call.1} parent=1 // pred_region
      _
    $region13: #{tpu_custom_call.1} parent=1 // pred_fallthru
      _
    // Predicated region
    $region14: #{tpu_custom_call.1} parent=1 // pred_check
      _
    $region15: #{tpu_custom_call.1} parent=1 // pred_check_branch
      %43 = sbr.rel (0) target = $region17
    $region16: #{tpu_custom_call.1} parent=1 // pred_region
      %s45 = ssub.s32 4096, 4096
      %46 = vsyncadd [#allocation6], %s45
      %s47 = sshll.u32 [#allocation7], 4
      %s48 = int_to_ptr.vmem [resolvable:$true] %s47
      %53 = dma.hbm_to_vmem [thread:$0]  %s3, 4096, %s48, [#allocation6], 128, 128, 8
    $region17: #{tpu_custom_call.1} parent=1 // pred_fallthru
      _
    // Predicated region
    $region18: #{tpu_custom_call.1} parent=1 // pred_check
      _
    $region19: #{tpu_custom_call.1} parent=1 // pred_check_branch
      %55 = sbr.rel (0) target = $region21
    $region20: #{tpu_custom_call.1} parent=1 // pred_region
      _
    $region21: #{tpu_custom_call.1} parent=1 // pred_fallthru
      _
    // Predicated region
    $region22: #{tpu_custom_call.1} parent=1 // pred_check
      _
    $region23: #{tpu_custom_call.1} parent=1 // pred_check_branch
      %57 = sbr.rel (0) target = $region25
    $region24: #{tpu_custom_call.1} parent=1 // pred_region
      %s59 = ssub.s32 2048, 2048
      %60 = vsyncadd [#allocation9], %s59
      %s61 = sshll.u32 [#allocation8], 4
      %s62 = int_to_ptr.vmem [resolvable:$true] %s61
      %67 = dma.hbm_to_vmem [thread:$0]  %s5, 2048, %s62, [#allocation9], 128, 128, 8
    $region25: #{tpu_custom_call.1} parent=1 // pred_fallthru
      _
    // Predicated region
    $region26: #{tpu_custom_call.1} parent=1 // pred_check
      _
    $region27: #{tpu_custom_call.1} parent=1 // pred_check_branch
      %69 = sbr.rel (0) target = $region29
    $region28: #{tpu_custom_call.1} parent=1 // pred_region
      _
    $region29: #{tpu_custom_call.1} parent=1 // pred_fallthru
      _
    // Predicated region
    $region30: #{tpu_custom_call.1} parent=1 // pred_check
      _
    $region31: #{tpu_custom_call.1} parent=1 // pred_check_branch
      %71 = sbr.rel (0) target = $region33
    $region32: #{tpu_custom_call.1} parent=1 // pred_region
      %72 = dma.done [#allocation3], 512
    $region33: #{tpu_custom_call.1} parent=1 // pred_fallthru
      _
    // Predicated region
    $region34: #{tpu_custom_call.1} parent=1 // pred_check
      _
    $region35: #{tpu_custom_call.1} parent=1 // pred_check_branch
      %74 = sbr.rel (0) target = $region37
    $region36: #{tpu_custom_call.1} parent=1 // pred_region
      %75 = dma.done [#allocation6], 2048
    $region37: #{tpu_custom_call.1} parent=1 // pred_fallthru
      _
    // Predicated region
    $region38: #{tpu_custom_call.1} parent=1 // pred_check
      _
    $region39: #{tpu_custom_call.1} parent=1 // pred_check_branch
      %77 = sbr.rel (0) target = $region41
    $region40: #{tpu_custom_call.1} parent=1 // pred_region
      %78 = dma.done [#allocation6], 4096
    $region41: #{tpu_custom_call.1} parent=1 // pred_fallthru
      _
    // Predicated region
    $region42: #{tpu_custom_call.1} parent=1 // pred_check
      _
    $region43: #{tpu_custom_call.1} parent=1 // pred_check_branch
      %80 = sbr.rel (0) target = $region45
    $region44: #{tpu_custom_call.1} parent=1 // pred_region
      %81 = dma.done [#allocation9], 2048
    $region45: #{tpu_custom_call.1} parent=1 // pred_fallthru
      _
    %v82 = vld [vmem:[#allocation2] sm:$0xff]
    %v83 = vld [vmem:[#allocation2 + $0x8] sm:$0xff]
    %v84 = vld [vmem:[#allocation2 + $0x10] sm:$0xff]
    %v85 = vld [vmem:[#allocation2 + $0x18] sm:$0xff]
    %v86 = vld [vmem:[#allocation5] sm:$0xff]
    %v87 = vld [vmem:[#allocation5 + $0x8] sm:$0xff]
    %v88 = vld [vmem:[#allocation5 + $0x10] sm:$0xff]
    %v89 = vld [vmem:[#allocation5 + $0x18] sm:$0xff]
    %v90 = vld [vmem:[#allocation5 + $0x20] sm:$0xff]
    %v91 = vld [vmem:[#allocation5 + $0x28] sm:$0xff]
    %v92 = vld [vmem:[#allocation5 + $0x30] sm:$0xff]
    %v93 = vld [vmem:[#allocation5 + $0x38] sm:$0xff]
    %v94 = vld [vmem:[#allocation5 + $0x40] sm:$0xff]
    %v95 = vld [vmem:[#allocation5 + $0x48] sm:$0xff]
    %v96 = vld [vmem:[#allocation5 + $0x50] sm:$0xff]
    %v97 = vld [vmem:[#allocation5 + $0x58] sm:$0xff]
    %v98 = vld [vmem:[#allocation5 + $0x60] sm:$0xff]
    %v99 = vld [vmem:[#allocation5 + $0x68] sm:$0xff]
    %v100 = vld [vmem:[#allocation5 + $0x70] sm:$0xff]
    %v101 = vld [vmem:[#allocation5 + $0x78] sm:$0xff]
    %v102 = vld [vmem:[%s2] sm:$0x1]
    %v104 = vlaneseq
    %v105 = vshrl.u32 %v104, 7
    %v106 = vsub.s32 0, %v105
    %v107 = vrot.slane %v102, %v106
    %109 = vmatprep.subr.mxu0 0.0
    %110 = vmatpush1.msra.mxu0 %v86
    %111 = vmatprep.subr.mxu0 0.0
    %112 = vmatpush1.msra.mxu0 %v87
    %113 = vmatprep.subr.mxu0 0.0
    %114 = vmatpush1.msra.mxu0 %v88
    %115 = vmatprep.subr.mxu0 0.0
    %116 = vmatpush1.msra.mxu0 %v89
    %117 = vmatprep.subr.mxu0 0.0
    %118 = vmatpush1.msra.mxu0 %v90
    %119 = vmatprep.subr.mxu0 0.0
    %120 = vmatpush1.msra.mxu0 %v91
    %121 = vmatprep.subr.mxu0 0.0
    %122 = vmatpush1.msra.mxu0 %v92
    %123 = vmatprep.subr.mxu0 0.0
    %124 = vmatpush1.msra.mxu0 %v93
    %125 = vmatprep.subr.mxu0 0.0
    %126 = vmatpush1.msra.mxu0 %v94
    %127 = vmatprep.subr.mxu0 0.0
    %128 = vmatpush1.msra.mxu0 %v95
    %129 = vmatprep.subr.mxu0 0.0
    %130 = vmatpush1.msra.mxu0 %v96
    %131 = vmatprep.subr.mxu0 0.0
    %132 = vmatpush1.msra.mxu0 %v97
    %133 = vmatprep.subr.mxu0 0.0
    %134 = vmatpush1.msra.mxu0 %v98
    %135 = vmatprep.subr.mxu0 0.0
    %136 = vmatpush1.msra.mxu0 %v99
    %137 = vmatprep.subr.mxu0 0.0
    %138 = vmatpush1.msra.mxu0 %v100
    %139 = vmatprep.subr.mxu0 0.0
    %140 = vmatpush1.msra.mxu0 %v101
    %141 = vmatprep.subr.mxu0 0.0
    %142 = vmatpush1.msra.mxu0 0.0
    %143 = vmatprep.subr.mxu0 0.0
    %144 = vmatpush1.msra.mxu0 0.0
    %145 = vmatprep.subr.mxu0 0.0
    %146 = vmatpush1.msra.mxu0 0.0
    %147 = vmatprep.subr.mxu0 0.0
    %148 = vmatpush1.msra.mxu0 0.0
    %149 = vmatprep.subr.mxu0 0.0
    %150 = vmatpush1.msra.mxu0 0.0
    %151 = vmatprep.subr.mxu0 0.0
    %152 = vmatpush1.msra.mxu0 0.0
    %153 = vmatprep.subr.mxu0 0.0
    %154 = vmatpush1.msra.mxu0 0.0
    %155 = vmatprep.subr.mxu0 0.0
    %156 = vmatpush1.msra.mxu0 0.0
    %157 = vmatprep.subr.mxu0 0.0
    %158 = vmatpush1.msra.mxu0 0.0
    %159 = vmatprep.subr.mxu0 0.0
    %160 = vmatpush1.msra.mxu0 0.0
    %161 = vmatprep.subr.mxu0 0.0
    %162 = vmatpush1.msra.mxu0 0.0
    %163 = vmatprep.subr.mxu0 0.0
    %164 = vmatpush1.msra.mxu0 0.0
    %165 = vmatprep.subr.mxu0 0.0
    %166 = vmatpush1.msra.mxu0 0.0
    %167 = vmatprep.subr.mxu0 0.0
    %168 = vmatpush1.msra.mxu0 0.0
    %169 = vmatprep.subr.mxu0 0.0
    %170 = vmatpush1.msra.mxu0 0.0
    %171 = vmatprep.subr.mxu0 0.0
    %172 = vmatpush1.msra.mxu0 0.0
    %173 = vmatprep.mubr.f32.mxu0 0.0
    %174 = vmatmul.mubr.f32.gmra.mrb[0].mxu0 %v82
    %v175 = vpop.f32.mrb[0].mxu0
    %v176 = vadd.f32 %v107, %v175
    %v177 = vpop.f32.mrb[0].mxu0
    %178 = vmatprep.mubr.f32.mxu0 0.0
    %179 = vmatmul.mubr.f32.gmra.mrb[0].mxu0 %v83
    %v180 = vpop.f32.mrb[0].mxu0
    %v181 = vadd.f32 %v107, %v180
    %v182 = vpop.f32.mrb[0].mxu0
    %183 = vmatprep.mubr.f32.mxu0 0.0
    %184 = vmatmul.mubr.f32.gmra.mrb[0].mxu0 %v84
    %v185 = vpop.f32.mrb[0].mxu0
    %v186 = vadd.f32 %v107, %v185
    %v187 = vpop.f32.mrb[0].mxu0
    %188 = vmatprep.mubr.f32.mxu0 0.0
    %189 = vmatmul.mubr.f32.gmra.mrb[0].mxu0 %v85
    %v190 = vpop.f32.mrb[0].mxu0
    %v191 = vadd.f32 %v107, %v190
    %v192 = vpop.f32.mrb[0].mxu0
    %193 = vdwg.mxu0
    %v194 = vmax.f32 %v176, 0.0
    %v195 = vmax.f32 %v181, 0.0
    %v196 = vmax.f32 %v186, 0.0
    %v197 = vmax.f32 %v191, 0.0
    %v198 = vld [vmem:[#allocation7] sm:$0xff]
    %v199 = vld [vmem:[#allocation7 + $0x8] sm:$0xff]
    %v200 = vld [vmem:[#allocation7 + $0x10] sm:$0xff]
    %v201 = vld [vmem:[#allocation7 + $0x18] sm:$0xff]
    %v202 = vld [vmem:[#allocation7 + $0x20] sm:$0xff]
    %v203 = vld [vmem:[#allocation7 + $0x28] sm:$0xff]
    %v204 = vld [vmem:[#allocation7 + $0x30] sm:$0xff]
    %v205 = vld [vmem:[#allocation7 + $0x38] sm:$0xff]
    %v206 = vld [vmem:[#allocation7 + $0x40] sm:$0xff]
    %v207 = vld [vmem:[#allocation7 + $0x48] sm:$0xff]
    %v208 = vld [vmem:[#allocation7 + $0x50] sm:$0xff]
    %v209 = vld [vmem:[#allocation7 + $0x58] sm:$0xff]
    %v210 = vld [vmem:[#allocation7 + $0x60] sm:$0xff]
    %v211 = vld [vmem:[#allocation7 + $0x68] sm:$0xff]
    %v212 = vld [vmem:[#allocation7 + $0x70] sm:$0xff]
    %v213 = vld [vmem:[#allocation7 + $0x78] sm:$0xff]
    %v214 = vld [vmem:[%s4] sm:$0x1]
    %v216 = vlaneseq
    %v217 = vshrl.u32 %v216, 7
    %v218 = vsub.s32 0, %v217
    %v219 = vrot.slane %v214, %v218
    %221 = vmatprep.subr.mxu0 0.0
    %222 = vmatpush1.msra.mxu0 %v198
    %223 = vmatprep.subr.mxu0 0.0
    %224 = vmatpush1.msra.mxu0 %v199
    %225 = vmatprep.subr.mxu0 0.0
    %226 = vmatpush1.msra.mxu0 %v200
    %227 = vmatprep.subr.mxu0 0.0
    %228 = vmatpush1.msra.mxu0 %v201
    %229 = vmatprep.subr.mxu0 0.0
    %230 = vmatpush1.msra.mxu0 %v202
    %231 = vmatprep.subr.mxu0 0.0
    %232 = vmatpush1.msra.mxu0 %v203
    %233 = vmatprep.subr.mxu0 0.0
    %234 = vmatpush1.msra.mxu0 %v204
    %235 = vmatprep.subr.mxu0 0.0
    %236 = vmatpush1.msra.mxu0 %v205
    %237 = vmatprep.subr.mxu0 0.0
    %238 = vmatpush1.msra.mxu0 %v206
    %239 = vmatprep.subr.mxu0 0.0
    %240 = vmatpush1.msra.mxu0 %v207
    %241 = vmatprep.subr.mxu0 0.0
    %242 = vmatpush1.msra.mxu0 %v208
    %243 = vmatprep.subr.mxu0 0.0
    %244 = vmatpush1.msra.mxu0 %v209
    %245 = vmatprep.subr.mxu0 0.0
    %246 = vmatpush1.msra.mxu0 %v210
    %247 = vmatprep.subr.mxu0 0.0
    %248 = vmatpush1.msra.mxu0 %v211
    %249 = vmatprep.subr.mxu0 0.0
    %250 = vmatpush1.msra.mxu0 %v212
    %251 = vmatprep.subr.mxu0 0.0
    %252 = vmatpush1.msra.mxu0 %v213
    %253 = vmatprep.subr.mxu0 0.0
    %254 = vmatpush1.msra.mxu0 0.0
    %255 = vmatprep.subr.mxu0 0.0
    %256 = vmatpush1.msra.mxu0 0.0
    %257 = vmatprep.subr.mxu0 0.0
    %258 = vmatpush1.msra.mxu0 0.0
    %259 = vmatprep.subr.mxu0 0.0
    %260 = vmatpush1.msra.mxu0 0.0
    %261 = vmatprep.subr.mxu0 0.0
    %262 = vmatpush1.msra.mxu0 0.0
    %263 = vmatprep.subr.mxu0 0.0
    %264 = vmatpush1.msra.mxu0 0.0
    %265 = vmatprep.subr.mxu0 0.0
    %266 = vmatpush1.msra.mxu0 0.0
    %267 = vmatprep.subr.mxu0 0.0
    %268 = vmatpush1.msra.mxu0 0.0
    %269 = vmatprep.subr.mxu0 0.0
    %270 = vmatpush1.msra.mxu0 0.0
    %271 = vmatprep.subr.mxu0 0.0
    %272 = vmatpush1.msra.mxu0 0.0
    %273 = vmatprep.subr.mxu0 0.0
    %274 = vmatpush1.msra.mxu0 0.0
    %275 = vmatprep.subr.mxu0 0.0
    %276 = vmatpush1.msra.mxu0 0.0
    %277 = vmatprep.subr.mxu0 0.0
    %278 = vmatpush1.msra.mxu0 0.0
    %279 = vmatprep.subr.mxu0 0.0
    %280 = vmatpush1.msra.mxu0 0.0
    %281 = vmatprep.subr.mxu0 0.0
    %282 = vmatpush1.msra.mxu0 0.0
    %283 = vmatprep.subr.mxu0 0.0
    %284 = vmatpush1.msra.mxu0 0.0
    %285 = vmatprep.mubr.f32.mxu0 0.0
    %286 = vmatmul.mubr.f32.gmra.mrb[0].mxu0 %v194
    %v287 = vpop.f32.mrb[0].mxu0
    %v288 = vadd.f32 %v219, %v287
    %v289 = vpop.f32.mrb[0].mxu0
    %290 = vmatprep.mubr.f32.mxu0 0.0
    %291 = vmatmul.mubr.f32.gmra.mrb[0].mxu0 %v195
    %v292 = vpop.f32.mrb[0].mxu0
    %v293 = vadd.f32 %v219, %v292
    %v294 = vpop.f32.mrb[0].mxu0
    %295 = vmatprep.mubr.f32.mxu0 0.0
    %296 = vmatmul.mubr.f32.gmra.mrb[0].mxu0 %v196
    %v297 = vpop.f32.mrb[0].mxu0
    %v298 = vadd.f32 %v219, %v297
    %v299 = vpop.f32.mrb[0].mxu0
    %300 = vmatprep.mubr.f32.mxu0 0.0
    %301 = vmatmul.mubr.f32.gmra.mrb[0].mxu0 %v197
    %v302 = vpop.f32.mrb[0].mxu0
    %v303 = vadd.f32 %v219, %v302
    %v304 = vpop.f32.mrb[0].mxu0
    %305 = vdwg.mxu0
    %v306 = vmax.f32 %v288, 0.0
    %v307 = vmax.f32 %v293, 0.0
    %v308 = vmax.f32 %v298, 0.0
    %v309 = vmax.f32 %v303, 0.0
    %s310 = scalar_lea.vmem [#allocation7], 128
    %v311 = vld [vmem:[%s310] sm:$0xff]
    %v312 = vld [vmem:[%s310 + $0x8] sm:$0xff]
    %v313 = vld [vmem:[%s310 + $0x10] sm:$0xff]
    %v314 = vld [vmem:[%s310 + $0x18] sm:$0xff]
    %v315 = vld [vmem:[%s310 + $0x20] sm:$0xff]
    %v316 = vld [vmem:[%s310 + $0x28] sm:$0xff]
    %v317 = vld [vmem:[%s310 + $0x30] sm:$0xff]
    %v318 = vld [vmem:[%s310 + $0x38] sm:$0xff]
    %v319 = vld [vmem:[%s310 + $0x40] sm:$0xff]
    %v320 = vld [vmem:[%s310 + $0x48] sm:$0xff]
    %v321 = vld [vmem:[%s310 + $0x50] sm:$0xff]
    %v322 = vld [vmem:[%s310 + $0x58] sm:$0xff]
    %v323 = vld [vmem:[%s310 + $0x60] sm:$0xff]
    %v324 = vld [vmem:[%s310 + $0x68] sm:$0xff]
    %v325 = vld [vmem:[%s310 + $0x70] sm:$0xff]
    %v326 = vld [vmem:[%s310 + $0x78] sm:$0xff]
    %s327 = scalar_lea.vmem %s4, 1
    %v328 = vld [vmem:[%s327] sm:$0x1]
    %v330 = vlaneseq
    %v331 = vshrl.u32 %v330, 7
    %v332 = vsub.s32 0, %v331
    %v333 = vrot.slane %v328, %v332
    %335 = vmatprep.subr.mxu0 0.0
    %336 = vmatpush1.msra.mxu0 %v311
    %337 = vmatprep.subr.mxu0 0.0
    %338 = vmatpush1.msra.mxu0 %v312
    %339 = vmatprep.subr.mxu0 0.0
    %340 = vmatpush1.msra.mxu0 %v313
    %341 = vmatprep.subr.mxu0 0.0
    %342 = vmatpush1.msra.mxu0 %v314
    %343 = vmatprep.subr.mxu0 0.0
    %344 = vmatpush1.msra.mxu0 %v315
    %345 = vmatprep.subr.mxu0 0.0
    %346 = vmatpush1.msra.mxu0 %v316
    %347 = vmatprep.subr.mxu0 0.0
    %348 = vmatpush1.msra.mxu0 %v317
    %349 = vmatprep.subr.mxu0 0.0
    %350 = vmatpush1.msra.mxu0 %v318
    %351 = vmatprep.subr.mxu0 0.0
    %352 = vmatpush1.msra.mxu0 %v319
    %353 = vmatprep.subr.mxu0 0.0
    %354 = vmatpush1.msra.mxu0 %v320
    %355 = vmatprep.subr.mxu0 0.0
    %356 = vmatpush1.msra.mxu0 %v321
    %357 = vmatprep.subr.mxu0 0.0
    %358 = vmatpush1.msra.mxu0 %v322
    %359 = vmatprep.subr.mxu0 0.0
    %360 = vmatpush1.msra.mxu0 %v323
    %361 = vmatprep.subr.mxu0 0.0
    %362 = vmatpush1.msra.mxu0 %v324
    %363 = vmatprep.subr.mxu0 0.0
    %364 = vmatpush1.msra.mxu0 %v325
    %365 = vmatprep.subr.mxu0 0.0
    %366 = vmatpush1.msra.mxu0 %v326
    %367 = vmatprep.subr.mxu0 0.0
    %368 = vmatpush1.msra.mxu0 0.0
    %369 = vmatprep.subr.mxu0 0.0
    %370 = vmatpush1.msra.mxu0 0.0
    %371 = vmatprep.subr.mxu0 0.0
    %372 = vmatpush1.msra.mxu0 0.0
    %373 = vmatprep.subr.mxu0 0.0
    %374 = vmatpush1.msra.mxu0 0.0
    %375 = vmatprep.subr.mxu0 0.0
    %376 = vmatpush1.msra.mxu0 0.0
    %377 = vmatprep.subr.mxu0 0.0
    %378 = vmatpush1.msra.mxu0 0.0
    %379 = vmatprep.subr.mxu0 0.0
    %380 = vmatpush1.msra.mxu0 0.0
    %381 = vmatprep.subr.mxu0 0.0
    %382 = vmatpush1.msra.mxu0 0.0
    %383 = vmatprep.subr.mxu0 0.0
    %384 = vmatpush1.msra.mxu0 0.0
    %385 = vmatprep.subr.mxu0 0.0
    %386 = vmatpush1.msra.mxu0 0.0
    %387 = vmatprep.subr.mxu0 0.0
    %388 = vmatpush1.msra.mxu0 0.0
    %389 = vmatprep.subr.mxu0 0.0
    %390 = vmatpush1.msra.mxu0 0.0
    %391 = vmatprep.subr.mxu0 0.0
    %392 = vmatpush1.msra.mxu0 0.0
    %393 = vmatprep.subr.mxu0 0.0
    %394 = vmatpush1.msra.mxu0 0.0
    %395 = vmatprep.subr.mxu0 0.0
    %396 = vmatpush1.msra.mxu0 0.0
    %397 = vmatprep.subr.mxu0 0.0
    %398 = vmatpush1.msra.mxu0 0.0
    %399 = vmatprep.mubr.f32.mxu0 0.0
    %400 = vmatmul.mubr.f32.gmra.mrb[0].mxu0 %v306
    %v401 = vpop.f32.mrb[0].mxu0
    %v402 = vadd.f32 %v333, %v401
    %v403 = vpop.f32.mrb[0].mxu0
    %404 = vmatprep.mubr.f32.mxu0 0.0
    %405 = vmatmul.mubr.f32.gmra.mrb[0].mxu0 %v307
    %v406 = vpop.f32.mrb[0].mxu0
    %v407 = vadd.f32 %v333, %v406
    %v408 = vpop.f32.mrb[0].mxu0
    %409 = vmatprep.mubr.f32.mxu0 0.0
    %410 = vmatmul.mubr.f32.gmra.mrb[0].mxu0 %v308
    %v411 = vpop.f32.mrb[0].mxu0
    %v412 = vadd.f32 %v333, %v411
    %v413 = vpop.f32.mrb[0].mxu0
    %414 = vmatprep.mubr.f32.mxu0 0.0
    %415 = vmatmul.mubr.f32.gmra.mrb[0].mxu0 %v309
    %v416 = vpop.f32.mrb[0].mxu0
    %v417 = vadd.f32 %v333, %v416
    %v418 = vpop.f32.mrb[0].mxu0
    %419 = vdwg.mxu0
    %v420 = vmax.f32 %v402, 0.0
    %v421 = vmax.f32 %v407, 0.0
    %v422 = vmax.f32 %v412, 0.0
    %v423 = vmax.f32 %v417, 0.0
    %v424 = vld [vmem:[#allocation8] sm:$0xff]
    %v425 = vld [vmem:[#allocation8 + $0x8] sm:$0xff]
    %v426 = vld [vmem:[#allocation8 + $0x10] sm:$0xff]
    %v427 = vld [vmem:[#allocation8 + $0x18] sm:$0xff]
    %v428 = vld [vmem:[#allocation8 + $0x20] sm:$0xff]
    %v429 = vld [vmem:[#allocation8 + $0x28] sm:$0xff]
    %v430 = vld [vmem:[#allocation8 + $0x30] sm:$0xff]
    %v431 = vld [vmem:[#allocation8 + $0x38] sm:$0xff]
    %v432 = vld [vmem:[#allocation8 + $0x40] sm:$0xff]
    %v433 = vld [vmem:[#allocation8 + $0x48] sm:$0xff]
    %v434 = vld [vmem:[#allocation8 + $0x50] sm:$0xff]
    %v435 = vld [vmem:[#allocation8 + $0x58] sm:$0xff]
    %v436 = vld [vmem:[#allocation8 + $0x60] sm:$0xff]
    %v437 = vld [vmem:[#allocation8 + $0x68] sm:$0xff]
    %v438 = vld [vmem:[#allocation8 + $0x70] sm:$0xff]
    %v439 = vld [vmem:[#allocation8 + $0x78] sm:$0xff]
    %v440 = vld [vmem:[%s6] sm:$0x1]
    %v442 = vlaneseq
    %v443 = vshrl.u32 %v442, 7
    %v444 = vsub.s32 0, %v443
    %v445 = vrot.slane %v440, %v444
    %447 = vmatprep.subr.mxu0 0.0
    %448 = vmatpush1.msra.mxu0 %v424
    %449 = vmatprep.subr.mxu0 0.0
    %450 = vmatpush1.msra.mxu0 %v425
    %451 = vmatprep.subr.mxu0 0.0
    %452 = vmatpush1.msra.mxu0 %v426
    %453 = vmatprep.subr.mxu0 0.0
    %454 = vmatpush1.msra.mxu0 %v427
    %455 = vmatprep.subr.mxu0 0.0
    %456 = vmatpush1.msra.mxu0 %v428
    %457 = vmatprep.subr.mxu0 0.0
    %458 = vmatpush1.msra.mxu0 %v429
    %459 = vmatprep.subr.mxu0 0.0
    %460 = vmatpush1.msra.mxu0 %v430
    %461 = vmatprep.subr.mxu0 0.0
    %462 = vmatpush1.msra.mxu0 %v431
    %463 = vmatprep.subr.mxu0 0.0
    %464 = vmatpush1.msra.mxu0 %v432
    %465 = vmatprep.subr.mxu0 0.0
    %466 = vmatpush1.msra.mxu0 %v433
    %467 = vmatprep.subr.mxu0 0.0
    %468 = vmatpush1.msra.mxu0 %v434
    %469 = vmatprep.subr.mxu0 0.0
    %470 = vmatpush1.msra.mxu0 %v435
    %471 = vmatprep.subr.mxu0 0.0
    %472 = vmatpush1.msra.mxu0 %v436
    %473 = vmatprep.subr.mxu0 0.0
    %474 = vmatpush1.msra.mxu0 %v437
    %475 = vmatprep.subr.mxu0 0.0
    %476 = vmatpush1.msra.mxu0 %v438
    %477 = vmatprep.subr.mxu0 0.0
    %478 = vmatpush1.msra.mxu0 %v439
    %479 = vmatprep.subr.mxu0 0.0
    %480 = vmatpush1.msra.mxu0 0.0
    %481 = vmatprep.subr.mxu0 0.0
    %482 = vmatpush1.msra.mxu0 0.0
    %483 = vmatprep.subr.mxu0 0.0
    %484 = vmatpush1.msra.mxu0 0.0
    %485 = vmatprep.subr.mxu0 0.0
    %486 = vmatpush1.msra.mxu0 0.0
    %487 = vmatprep.subr.mxu0 0.0
    %488 = vmatpush1.msra.mxu0 0.0
    %489 = vmatprep.subr.mxu0 0.0
    %490 = vmatpush1.msra.mxu0 0.0
    %491 = vmatprep.subr.mxu0 0.0
    %492 = vmatpush1.msra.mxu0 0.0
    %493 = vmatprep.subr.mxu0 0.0
    %494 = vmatpush1.msra.mxu0 0.0
    %495 = vmatprep.subr.mxu0 0.0
    %496 = vmatpush1.msra.mxu0 0.0
    %497 = vmatprep.subr.mxu0 0.0
    %498 = vmatpush1.msra.mxu0 0.0
    %499 = vmatprep.subr.mxu0 0.0
    %500 = vmatpush1.msra.mxu0 0.0
    %501 = vmatprep.subr.mxu0 0.0
    %502 = vmatpush1.msra.mxu0 0.0
    %503 = vmatprep.subr.mxu0 0.0
    %504 = vmatpush1.msra.mxu0 0.0
    %505 = vmatprep.subr.mxu0 0.0
    %506 = vmatpush1.msra.mxu0 0.0
    %507 = vmatprep.subr.mxu0 0.0
    %508 = vmatpush1.msra.mxu0 0.0
    %509 = vmatprep.subr.mxu0 0.0
    %510 = vmatpush1.msra.mxu0 0.0
    %511 = vmatprep.mubr.f32.mxu0 0.0
    %512 = vmatmul.mubr.f32.gmra.mrb[0].mxu0 %v420
    %v513 = vpop.f32.mrb[0].mxu0
    %v514 = vadd.f32 %v445, %v513
    %v515 = vpop.f32.mrb[0].mxu0
    %516 = vmatprep.mubr.f32.mxu0 0.0
    %517 = vmatmul.mubr.f32.gmra.mrb[0].mxu0 %v421
    %v518 = vpop.f32.mrb[0].mxu0
    %v519 = vadd.f32 %v445, %v518
    %v520 = vpop.f32.mrb[0].mxu0
    %521 = vmatprep.mubr.f32.mxu0 0.0
    %522 = vmatmul.mubr.f32.gmra.mrb[0].mxu0 %v422
    %v523 = vpop.f32.mrb[0].mxu0
    %v524 = vadd.f32 %v445, %v523
    %v525 = vpop.f32.mrb[0].mxu0
    %526 = vmatprep.mubr.f32.mxu0 0.0
    %527 = vmatmul.mubr.f32.gmra.mrb[0].mxu0 %v423
    %v528 = vpop.f32.mrb[0].mxu0
    %v529 = vadd.f32 %v445, %v528
    %v530 = vpop.f32.mrb[0].mxu0
    %531 = vdwg.mxu0
    %532 = vst [vmem:[#allocation10] sm:$0xff] %v514
    %533 = vst [vmem:[#allocation10 + $0x8] sm:$0xff] %v519
    %534 = vst [vmem:[#allocation10 + $0x10] sm:$0xff] %v524
    %535 = vst [vmem:[#allocation10 + $0x18] sm:$0xff] %v529
    // Predicated region
    $region46: #{tpu_custom_call.1} parent=1 // pred_check
      _
    $region47: #{tpu_custom_call.1} parent=1 // pred_check_branch
      %537 = sbr.rel (0) target = $region49
    $region48: #{tpu_custom_call.1} parent=1 // pred_region
      %s539 = ssub.s32 512, 512
      %540 = vsyncadd [#allocation4], %s539
      %s541 = sshll.u32 [#allocation10], 4
      %s542 = int_to_ptr.vmem [resolvable:$true] %s541
      %547 = dma.vmem_to_hbm [thread:$0]  %s542, 512, %s7, [#allocation4], 128, 128, 8
    $region49: #{tpu_custom_call.1} parent=1 // pred_fallthru
      _
    // Predicated region
    $region50: #{tpu_custom_call.1} parent=1 // pred_check
      _
    $region51: #{tpu_custom_call.1} parent=1 // pred_check_branch
      %549 = sbr.rel (0) target = $region53
    $region52: #{tpu_custom_call.1} parent=1 // pred_region
      %550 = dma.done [#allocation4], 512
    $region53: #{tpu_custom_call.1} parent=1 // pred_fallthru
      _
    %551 = vsyncpa [#allocation3], 1
    %552 = vsyncpa [#allocation6], 1
    %553 = vsyncpa [#allocation9], 1
    %554 = vsyncpa [#allocation4], 1

</llo_original>
